<compile_context>
chip_gen: v5e
topology: v5e:2x2
jax: 0.10.0
libtpu: 0.0.40
codegen_flags: <defaults>
</compile_context>

<pallas_src>
import functools

import jax
import jax.numpy as jnp
from jax.experimental import pallas as pl
from jax.experimental.pallas import tpu as pltpu

EPS = 1e-5


# ---------------------------------------------------------------------------
# Pallas kernels
# ---------------------------------------------------------------------------
def _conv3x3_kernel(x_ref, scale_ref, shift_ref, b_ref, y_ref, s_ref, sq_ref,
                    xg_scr, *, pre_act):
    """[optional fused prev-block BN+ReLU] -> 3x3 conv (3 lane-dense banded
    MXU dots) -> lane-dense store + BN partial sums.

    x_ref             : (1, H, W*Cin)  bf16  lane-dense activation
    scale_ref/shift_ref: (1, W*Cin)    f32   prev-block BN affine (if pre_act)
    b_ref             : (3, W*Cin, W*Cout) bf16  banded weights (kh-major);
                         horizontal zero-padding is folded into the band
    y_ref             : (1, H, W*Cout)       raw conv output, lane-dense
    s_ref, sq_ref     : (1, 1, W*Cout) f32   per-image BN partial sums
    xg_scr            : (H+2, W*Cin)   f32   vertically zero-padded staging
    """
    h = x_ref.shape[1]
    wcin = x_ref.shape[2]

    x = x_ref[0].astype(jnp.float32)
    if pre_act:
        # Fused BatchNorm (previous block's batch stats) + ReLU on the operand
        # -> the normalized activation never hits HBM.
        x = jnp.maximum(x * scale_ref[...] + shift_ref[...], 0.0)

    # Vertical zero padding lives in the scratch border rows; horizontal
    # padding is encoded in the banded weight matrix, so no padded copy of the
    # activation is ever materialized.
    zrow = jnp.zeros((1, wcin), jnp.float32)
    xg_scr[0:1, :] = zrow
    xg_scr[h + 1:h + 2, :] = zrow
    xg_scr[1:h + 1, :] = x

    # 3 MXU dots, one per kh tap row: (H, W*Cin) @ (W*Cin, W*Cout), f32 acc.
    acc = jnp.dot(xg_scr[0:h, :].astype(jnp.bfloat16), b_ref[0],
                  preferred_element_type=jnp.float32)
    acc = acc + jnp.dot(xg_scr[1:h + 1, :].astype(jnp.bfloat16), b_ref[1],
                        preferred_element_type=jnp.float32)
    acc = acc + jnp.dot(xg_scr[2:h + 2, :].astype(jnp.bfloat16), b_ref[2],
                        preferred_element_type=jnp.float32)

    # Lane-dense store (W*Cout = 128 lanes here -> unmasked full-lane vst).
    y_ref[0] = acc.astype(y_ref.dtype)

    # BN batch statistics straight from the f32 accumulator in vregs.
    s_ref[0] = jnp.sum(acc, axis=0, keepdims=True)
    sq_ref[0] = jnp.sum(acc * acc, axis=0, keepdims=True)


def _bn_relu_kernel(y_ref, scale_ref, shift_ref, o_ref):
    """Lane-dense normalize + ReLU for the final block output."""
    o_ref[...] = jnp.maximum(
        y_ref[...].astype(jnp.float32) * scale_ref[...] + shift_ref[...],
        0.0).astype(o_ref.dtype)


# ---------------------------------------------------------------------------
# Pallas wrappers
# ---------------------------------------------------------------------------
def _pick_row_tile(m, max_tile=512):
    """Largest sublane-aligned divisor of m yielding a grid of >= 2 steps
    (both v7x TensorCores get work), capped at max_tile."""
    cap = min(max_tile, m // 2)
    for t in range(cap, 7, -1):
        if m % t == 0 and t % 8 == 0:
            return t
    return m  # fall back to a single step (block == full array)


def _conv_block(x_lane, scale_row, shift_row, bmat, *, pre_act, out_dtype):
    """x_lane: (N, H, W*Cin) bf16, bmat: (3, W*Cin, W*Cout) bf16.
    Returns raw conv output (N, H, W*Cout) + per-image BN partial sums."""
    N, H, WCin = x_lane.shape
    WCout = bmat.shape[2]
    return pl.pallas_call(
        functools.partial(_conv3x3_kernel, pre_act=pre_act),
        out_shape=(jax.ShapeDtypeStruct((N, H, WCout), out_dtype),
                   jax.ShapeDtypeStruct((N, 1, WCout), jnp.float32),
                   jax.ShapeDtypeStruct((N, 1, WCout), jnp.float32)),
        grid_spec=pltpu.PrefetchScalarGridSpec(
            num_scalar_prefetch=0,
            grid=(N,),
            in_specs=[
                pl.BlockSpec((1, H, WCin), lambda n: (n, 0, 0)),
                pl.BlockSpec((1, WCin), lambda n: (0, 0)),
                pl.BlockSpec((1, WCin), lambda n: (0, 0)),
                pl.BlockSpec((3, WCin, WCout), lambda n: (0, 0, 0)),
            ],
            out_specs=(
                pl.BlockSpec((1, H, WCout), lambda n: (n, 0, 0)),
                pl.BlockSpec((1, 1, WCout), lambda n: (n, 0, 0)),
                pl.BlockSpec((1, 1, WCout), lambda n: (n, 0, 0)),
            ),
            scratch_shapes=[pltpu.VMEM((H + 2, WCin), jnp.float32)],
        ),
        compiler_params=pltpu.CompilerParams(
            dimension_semantics=("parallel",),            # grid = N >= 2
            vmem_limit_bytes=48 * 1024 * 1024),
    )(x_lane, scale_row, shift_row, bmat)


def _bn_relu(y2d, scale_row, shift_row, out_dtype=jnp.float32):
    """y2d: (N*H, W*C) f32, scale/shift: (1, W*C) -> normalized+ReLU output."""
    M, Wd = y2d.shape
    tm = _pick_row_tile(M)
    return pl.pallas_call(
        _bn_relu_kernel,
        out_shape=jax.ShapeDtypeStruct((M, Wd), out_dtype),
        grid_spec=pltpu.PrefetchScalarGridSpec(
            num_scalar_prefetch=0,
            grid=(M // tm,),
            in_specs=[
                pl.BlockSpec((tm, Wd), lambda i: (i, 0)),
                pl.BlockSpec((1, Wd), lambda i: (0, 0)),
                pl.BlockSpec((1, Wd), lambda i: (0, 0)),
            ],
            out_specs=pl.BlockSpec((tm, Wd), lambda i: (i, 0))),
        compiler_params=pltpu.CompilerParams(
            dimension_semantics=("parallel",),
            vmem_limit_bytes=48 * 1024 * 1024),
    )(y2d, scale_row, shift_row)


# ---------------------------------------------------------------------------
# Weight / BN-affine preparation (tiny XLA, runs once per call)
# ---------------------------------------------------------------------------
def _band_weights(w_oihw, W):
    """(Cout, Cin, 3, 3) -> (3, W*Cin, W*Cout) bf16 banded matrices B_kh with
    B[kh, q*Cin+ci, w*Cout+co] = w[co, ci, kh, q-w+1] when q-w+1 in {0,1,2},
    else 0 (this encodes the horizontal zero padding)."""
    Cout, Cin = w_oihw.shape[0], w_oihw.shape[1]
    wt = jnp.transpose(w_oihw, (2, 3, 1, 0)).astype(jnp.float32)  # (kh,kw,ci,co)
    kw = jnp.arange(3)[:, None, None]
    q = jnp.arange(W)[None, :, None]
    w = jnp.arange(W)[None, None, :]
    sel = (q == w + kw - 1).astype(jnp.float32)                    # (3, W, W)
    b = jnp.einsum("xqw,axco->aqcwo", sel, wt)                     # (3,W,Cin,W,Cout)
    return b.reshape(3, W * Cin, W * Cout).astype(jnp.bfloat16)


def _bn_scale_shift(psum, psq, gamma, beta, count, W, Cout):
    """Finalize BN batch stats (biased var) and channel-tile to lane width."""
    s = jnp.sum(psum.reshape(-1, W, Cout), axis=(0, 1))
    q = jnp.sum(psq.reshape(-1, W, Cout), axis=(0, 1))
    mean = s / count
    var = jnp.maximum(q / count - mean * mean, 0.0)
    inv = gamma.astype(jnp.float32) * jax.lax.rsqrt(var + EPS)
    shift = beta.astype(jnp.float32) - mean * inv
    # lane layout is w*Cout + c -> channel vector tiled W times
    return jnp.tile(inv, W)[None, :], jnp.tile(shift, W)[None, :]


# ---------------------------------------------------------------------------
# UNetBlock forward
# ---------------------------------------------------------------------------
@jax.jit
def unet_block(x_nchw, w1, g1, b1, w2, g2, b2):
    N, Cin, H, W = x_nchw.shape
    Cout = w1.shape[0]
    cnt = float(N * H * W)

    # NCHW -> lane-dense (N, H, W*Cin) in bf16 (halves the conv input DMA).
    x = jnp.transpose(x_nchw, (0, 2, 3, 1)).reshape(N, H, W * Cin)
    x = x.astype(jnp.bfloat16)

    b1m = _band_weights(w1, W)          # (3, W*Cin,  W*Cout)
    b2m = _band_weights(w2, W)          # (3, W*Cout, W*Cout)

    ones1 = jnp.ones((1, W * Cin), jnp.float32)     # unused (pre_act=False)
    zeros1 = jnp.zeros((1, W * Cin), jnp.float32)

    # Block 1: conv1 + BN1 partial stats; raw bf16 output stays lane-dense.
    y1, s1, q1 = _conv_block(x, ones1, zeros1, b1m,
                             pre_act=False, out_dtype=jnp.bfloat16)
    scale1, shift1 = _bn_scale_shift(s1, q1, g1, b1, cnt, W, Cout)

    # Block 2: BN1+ReLU fused into conv2's operand; conv2 + BN2 partial stats.
    y2, s2, q2 = _conv_block(y1, scale1, shift1, b2m,
                             pre_act=True, out_dtype=jnp.float32)
    scale2, shift2 = _bn_scale_shift(s2, q2, g2, b2, cnt, W, Cout)

    # Final BN2 + ReLU (lane-dense elementwise pass).
    out = _bn_relu(y2.reshape(N * H, W * Cout), scale2, shift2)
    out = out.reshape(N, H, W, Cout)
    return jnp.transpose(out, (0, 3, 1, 2))          # NHWC -> NCHW


# ---------------------------------------------------------------------------
# Pure-JAX reference (for correctness check)
# ---------------------------------------------------------------------------
def unet_block_ref(x, w1, g1, b1, w2, g2, b2):
    def conv(x, w):
        return jax.lax.conv_general_dilated(
            x, w, (1, 1), ((1, 1), (1, 1)),
            dimension_numbers=("NCHW", "OIHW", "NCHW"))

    def bnr(y, g, b):
        mean = jnp.mean(y, axis=(0, 2, 3), keepdims=True)
        var = jnp.mean((y - mean) ** 2, axis=(0, 2, 3), keepdims=True)
        yn = (y - mean) * jax.lax.rsqrt(var + EPS)
        yn = yn * g.reshape(1, -1, 1, 1) + b.reshape(1, -1, 1, 1)
        return jnp.maximum(yn, 0.0)

    y = bnr(conv(x, w1), g1, b1)
    y = bnr(conv(y, w2), g2, b2)
    return y


# ---------------------------------------------------------------------------
if __name__ == "__main__":
    N, C_in, C_out, H, W = 2, 4, 8, 16, 16

    key = jax.random.PRNGKey(0)
    k1, k2, kx = jax.random.split(key, 3)

    x = jax.random.normal(kx, (N, C_in, H, W), dtype=jnp.float32)

    # Deterministic parameter init (synthetic; matches module parameter shapes).
    w1 = 0.1 * jax.random.normal(k1, (C_out, C_in, 3, 3), dtype=jnp.float32)
    w2 = 0.1 * jax.random.normal(k2, (C_out, C_out, 3, 3), dtype=jnp.float32)
    g1 = jnp.ones((C_out,), jnp.float32)   # BatchNorm2d default weight
    b1 = jnp.zeros((C_out,), jnp.float32)  # BatchNorm2d default bias
    g2 = jnp.ones((C_out,), jnp.float32)
    b2 = jnp.zeros((C_out,), jnp.float32)

    out = unet_block(x, w1, g1, b1, w2, g2, b2)
    out = jax.block_until_ready(out)

    ref = unet_block_ref(x, w1, g1, b1, w2, g2, b2)
    assert out.shape == (N, C_out, H, W), out.shape
    assert jnp.allclose(out, ref, rtol=2e-2, atol=2e-2), "mismatch vs reference"

    print("KERNEL_OK")
</pallas_src>

<mosaic_0001>
module attributes {stable_mosaic.version = 11 : i64} {
  func.func @_conv3x3_kernel(%arg0: i32, %arg1: memref<1x16x64xbf16, #tpu.memory_space<vmem>>, %arg2: memref<1x64xf32, #tpu.memory_space<vmem>>, %arg3: memref<1x64xf32, #tpu.memory_space<vmem>>, %arg4: memref<3x64x128xbf16, #tpu.memory_space<vmem>>, %arg5: memref<1x16x128xbf16, #tpu.memory_space<vmem>>, %arg6: memref<1x1x128xf32, #tpu.memory_space<vmem>>, %arg7: memref<1x1x128xf32, #tpu.memory_space<vmem>>, %arg8: memref<18x64xf32, #tpu.memory_space<vmem>>) attributes {dimension_semantics = [#tpu.dimension_semantics<parallel>], iteration_bounds = array<i64: 2>, scalar_prefetch = 0 : i64, scratch_operands = 1 : i64, tpu.core_type = #tpu.core_type<tc>, window_params = [{transform_indices = @transform_0, window_bounds = array<i64: 1, 16, 64>}, {pipeline_mode = #tpu.pipeline_mode<synchronous>, transform_indices = @transform_1, window_bounds = array<i64: 1, 64>}, {pipeline_mode = #tpu.pipeline_mode<synchronous>, transform_indices = @transform_2, window_bounds = array<i64: 1, 64>}, {pipeline_mode = #tpu.pipeline_mode<synchronous>, transform_indices = @transform_3, window_bounds = array<i64: 3, 64, 128>}, {transform_indices = @transform_4, window_bounds = array<i64: 1, 16, 128>}, {transform_indices = @transform_5, window_bounds = array<i64: 1, 1, 128>}, {transform_indices = @transform_6, window_bounds = array<i64: 1, 1, 128>}]} {
    %c0 = arith.constant 0 : index
    %c0_0 = arith.constant 0 : index
    %c0_1 = arith.constant 0 : index
    %0 = vector.load %arg1[%c0, %c0_0, %c0_1] : memref<1x16x64xbf16, #tpu.memory_space<vmem>>, vector<1x16x64xbf16>
    %1 = vector.shape_cast %0 : vector<1x16x64xbf16> to vector<16x64xbf16>
    %2 = arith.extf %1 : vector<16x64xbf16> to vector<16x64xf32>
    %cst = arith.constant 0.000000e+00 : f32
    %3 = vector.broadcast %cst : f32 to vector<1x64xf32>
    %c0_2 = arith.constant 0 : index
    %c0_3 = arith.constant 0 : index
    %4 = vector.load %arg8[%c0_2, %c0_3] : memref<18x64xf32, #tpu.memory_space<vmem>>, vector<1x64xf32>
    tpu.vector_store %arg8[%c0_2, %c0_3], %3 {strides = array<i32>} : memref<18x64xf32, #tpu.memory_space<vmem>>, vector<1x64xf32>,
    %c17 = arith.constant 17 : index
    %c0_4 = arith.constant 0 : index
    %5 = vector.load %arg8[%c17, %c0_4] : memref<18x64xf32, #tpu.memory_space<vmem>>, vector<1x64xf32>
    tpu.vector_store %arg8[%c17, %c0_4], %3 {strides = array<i32>} : memref<18x64xf32, #tpu.memory_space<vmem>>, vector<1x64xf32>,
    %c1 = arith.constant 1 : index
    %c0_5 = arith.constant 0 : index
    %6 = vector.load %arg8[%c1, %c0_5] : memref<18x64xf32, #tpu.memory_space<vmem>>, vector<16x64xf32>
    tpu.vector_store %arg8[%c1, %c0_5], %2 {strides = array<i32>} : memref<18x64xf32, #tpu.memory_space<vmem>>, vector<16x64xf32>,
    %c0_6 = arith.constant 0 : index
    %c0_7 = arith.constant 0 : index
    %7 = vector.load %arg8[%c0_6, %c0_7] : memref<18x64xf32, #tpu.memory_space<vmem>>, vector<16x64xf32>
    %8 = arith.truncf %7 : vector<16x64xf32> to vector<16x64xbf16>
    %c0_8 = arith.constant 0 : index
    %c0_9 = arith.constant 0 : index
    %c0_10 = arith.constant 0 : index
    %9 = vector.load %arg4[%c0_8, %c0_9, %c0_10] : memref<3x64x128xbf16, #tpu.memory_space<vmem>>, vector<1x64x128xbf16>
    %10 = vector.shape_cast %9 : vector<1x64x128xbf16> to vector<64x128xbf16>
    %cst_11 = arith.constant dense<0.000000e+00> : vector<16x128xf32>
    %11 = tpu.matmul %8, %10, %cst_11 {dimension_numbers = #tpu.dot_dimension_numbers<[1], [0], [0], [1], [0, 0, 1, 1], [], []>} : vector<16x64xbf16>, vector<64x128xbf16>, vector<16x128xf32> -> vector<16x128xf32>
    %c1_12 = arith.constant 1 : index
    %c0_13 = arith.constant 0 : index
    %12 = vector.load %arg8[%c1_12, %c0_13] : memref<18x64xf32, #tpu.memory_space<vmem>>, vector<16x64xf32>
    %13 = arith.truncf %12 : vector<16x64xf32> to vector<16x64xbf16>
    %c1_14 = arith.constant 1 : index
    %c0_15 = arith.constant 0 : index
    %c0_16 = arith.constant 0 : index
    %14 = vector.load %arg4[%c1_14, %c0_15, %c0_16] : memref<3x64x128xbf16, #tpu.memory_space<vmem>>, vector<1x64x128xbf16>
    %15 = vector.shape_cast %14 : vector<1x64x128xbf16> to vector<64x128xbf16>
    %cst_17 = arith.constant dense<0.000000e+00> : vector<16x128xf32>
    %16 = tpu.matmul %13, %15, %cst_17 {dimension_numbers = #tpu.dot_dimension_numbers<[1], [0], [0], [1], [0, 0, 1, 1], [], []>} : vector<16x64xbf16>, vector<64x128xbf16>, vector<16x128xf32> -> vector<16x128xf32>
    %17 = arith.addf %11, %16 : vector<16x128xf32>
    %c2 = arith.constant 2 : index
    %c0_18 = arith.constant 0 : index
    %18 = vector.load %arg8[%c2, %c0_18] : memref<18x64xf32, #tpu.memory_space<vmem>>, vector<16x64xf32>
    %19 = arith.truncf %18 : vector<16x64xf32> to vector<16x64xbf16>
    %c2_19 = arith.constant 2 : index
    %c0_20 = arith.constant 0 : index
    %c0_21 = arith.constant 0 : index
    %20 = vector.load %arg4[%c2_19, %c0_20, %c0_21] : memref<3x64x128xbf16, #tpu.memory_space<vmem>>, vector<1x64x128xbf16>
    %21 = vector.shape_cast %20 : vector<1x64x128xbf16> to vector<64x128xbf16>
    %cst_22 = arith.constant dense<0.000000e+00> : vector<16x128xf32>
    %22 = tpu.matmul %19, %21, %cst_22 {dimension_numbers = #tpu.dot_dimension_numbers<[1], [0], [0], [1], [0, 0, 1, 1], [], []>} : vector<16x64xbf16>, vector<64x128xbf16>, vector<16x128xf32> -> vector<16x128xf32>
    %23 = arith.addf %17, %22 : vector<16x128xf32>
    %24 = arith.truncf %23 : vector<16x128xf32> to vector<16x128xbf16>
    %c0_23 = arith.constant 0 : index
    %c0_24 = arith.constant 0 : index
    %c0_25 = arith.constant 0 : index
    %25 = vector.load %arg5[%c0_23, %c0_24, %c0_25] : memref<1x16x128xbf16, #tpu.memory_space<vmem>>, vector<1x16x128xbf16>
    %26 = vector.shape_cast %25 : vector<1x16x128xbf16> to vector<16x128xbf16>
    %27 = vector.shape_cast %24 : vector<16x128xbf16> to vector<1x16x128xbf16>
    tpu.vector_store %arg5[%c0_23, %c0_24, %c0_25], %27 {strides = array<i32>} : memref<1x16x128xbf16, #tpu.memory_space<vmem>>, vector<1x16x128xbf16>,
    %cst_26 = arith.constant dense<0.000000e+00> : vector<128xf32>
    %28 = vector.multi_reduction <add>, %23, %cst_26 [0] : vector<16x128xf32> to vector<128xf32>
    %29 = vector.shape_cast %28 : vector<128xf32> to vector<1x128xf32>
    %c0_27 = arith.constant 0 : index
    %c0_28 = arith.constant 0 : index
    %c0_29 = arith.constant 0 : index
    %30 = vector.load %arg6[%c0_27, %c0_28, %c0_29] : memref<1x1x128xf32, #tpu.memory_space<vmem>>, vector<1x1x128xf32>
    %31 = vector.shape_cast %30 : vector<1x1x128xf32> to vector<1x128xf32>
    %32 = vector.shape_cast %29 : vector<1x128xf32> to vector<1x1x128xf32>
    tpu.vector_store %arg6[%c0_27, %c0_28, %c0_29], %32 {strides = array<i32>} : memref<1x1x128xf32, #tpu.memory_space<vmem>>, vector<1x1x128xf32>,
    %33 = arith.mulf %23, %23 : vector<16x128xf32>
    %cst_30 = arith.constant dense<0.000000e+00> : vector<128xf32>
    %34 = vector.multi_reduction <add>, %33, %cst_30 [0] : vector<16x128xf32> to vector<128xf32>
    %35 = vector.shape_cast %34 : vector<128xf32> to vector<1x128xf32>
    %c0_31 = arith.constant 0 : index
    %c0_32 = arith.constant 0 : index
    %c0_33 = arith.constant 0 : index
    %36 = vector.load %arg7[%c0_31, %c0_32, %c0_33] : memref<1x1x128xf32, #tpu.memory_space<vmem>>, vector<1x1x128xf32>
    %37 = vector.shape_cast %36 : vector<1x1x128xf32> to vector<1x128xf32>
    %38 = vector.shape_cast %35 : vector<1x128xf32> to vector<1x1x128xf32>
    tpu.vector_store %arg7[%c0_31, %c0_32, %c0_33], %38 {strides = array<i32>} : memref<1x1x128xf32, #tpu.memory_space<vmem>>, vector<1x1x128xf32>,
    return
  }
  func.func @transform_0(%arg0: i32) -> (i32, i32, i32) {
    %c0_i32 = arith.constant 0 : i32
    %c0_i32_0 = arith.constant 0 : i32
    %c0_i32_1 = arith.constant 0 : i32
    return %arg0, %c0_i32, %c0_i32_0 : i32, i32, i32
  }
  func.func @transform_1(%arg0: i32) -> (i32, i32) {
    %c0_i32 = arith.constant 0 : i32
    %c0_i32_0 = arith.constant 0 : i32
    %c0_i32_1 = arith.constant 0 : i32
    return %c0_i32, %c0_i32_0 : i32, i32
  }
  func.func @transform_2(%arg0: i32) -> (i32, i32) {
    %c0_i32 = arith.constant 0 : i32
    %c0_i32_0 = arith.constant 0 : i32
    %c0_i32_1 = arith.constant 0 : i32
    return %c0_i32, %c0_i32_0 : i32, i32
  }
  func.func @transform_3(%arg0: i32) -> (i32, i32, i32) {
    %c0_i32 = arith.constant 0 : i32
    %c0_i32_0 = arith.constant 0 : i32
    %c0_i32_1 = arith.constant 0 : i32
    %c0_i32_2 = arith.constant 0 : i32
    return %c0_i32, %c0_i32_0, %c0_i32_1 : i32, i32, i32
  }
  func.func @transform_4(%arg0: i32) -> (i32, i32, i32) {
    %c0_i32 = arith.constant 0 : i32
    %c0_i32_0 = arith.constant 0 : i32
    %c0_i32_1 = arith.constant 0 : i32
    return %arg0, %c0_i32, %c0_i32_0 : i32, i32, i32
  }
  func.func @transform_5(%arg0: i32) -> (i32, i32, i32) {
    %c0_i32 = arith.constant 0 : i32
    %c0_i32_0 = arith.constant 0 : i32
    %c0_i32_1 = arith.constant 0 : i32
    return %arg0, %c0_i32, %c0_i32_0 : i32, i32, i32
  }
  func.func @transform_6(%arg0: i32) -> (i32, i32, i32) {
    %c0_i32 = arith.constant 0 : i32
    %c0_i32_0 = arith.constant 0 : i32
    %c0_i32_1 = arith.constant 0 : i32
    return %arg0, %c0_i32, %c0_i32_0 : i32, i32, i32
  }
}

module attributes {stable_mosaic.version = 11 : i64} {
  func.func @_conv3x3_kernel(%arg0: i32, %arg1: memref<1x16x128xbf16, #tpu.memory_space<vmem>>, %arg2: memref<1x128xf32, #tpu.memory_space<vmem>>, %arg3: memref<1x128xf32, #tpu.memory_space<vmem>>, %arg4: memref<3x128x128xbf16, #tpu.memory_space<vmem>>, %arg5: memref<1x16x128xf32, #tpu.memory_space<vmem>>, %arg6: memref<1x1x128xf32, #tpu.memory_space<vmem>>, %arg7: memref<1x1x128xf32, #tpu.memory_space<vmem>>, %arg8: memref<18x128xf32, #tpu.memory_space<vmem>>) attributes {dimension_semantics = [#tpu.dimension_semantics<parallel>], iteration_bounds = array<i64: 2>, scalar_prefetch = 0 : i64, scratch_operands = 1 : i64, tpu.core_type = #tpu.core_type<tc>, window_params = [{transform_indices = @transform_0, window_bounds = array<i64: 1, 16, 128>}, {pipeline_mode = #tpu.pipeline_mode<synchronous>, transform_indices = @transform_1, window_bounds = array<i64: 1, 128>}, {pipeline_mode = #tpu.pipeline_mode<synchronous>, transform_indices = @transform_2, window_bounds = array<i64: 1, 128>}, {pipeline_mode = #tpu.pipeline_mode<synchronous>, transform_indices = @transform_3, window_bounds = array<i64: 3, 128, 128>}, {transform_indices = @transform_4, window_bounds = array<i64: 1, 16, 128>}, {transform_indices = @transform_5, window_bounds = array<i64: 1, 1, 128>}, {transform_indices = @transform_6, window_bounds = array<i64: 1, 1, 128>}]} {
    %c0 = arith.constant 0 : index
    %c0_0 = arith.constant 0 : index
    %c0_1 = arith.constant 0 : index
    %0 = vector.load %arg1[%c0, %c0_0, %c0_1] : memref<1x16x128xbf16, #tpu.memory_space<vmem>>, vector<1x16x128xbf16>
    %1 = vector.shape_cast %0 : vector<1x16x128xbf16> to vector<16x128xbf16>
    %2 = arith.extf %1 : vector<16x128xbf16> to vector<16x128xf32>
    %c0_2 = arith.constant 0 : index
    %c0_3 = arith.constant 0 : index
    %3 = vector.load %arg2[%c0_2, %c0_3] : memref<1x128xf32, #tpu.memory_space<vmem>>, vector<1x128xf32>
    %4 = vector.broadcast %3 : vector<1x128xf32> to vector<16x128xf32>
    %5 = arith.mulf %2, %4 : vector<16x128xf32>
    %c0_4 = arith.constant 0 : index
    %c0_5 = arith.constant 0 : index
    %6 = vector.load %arg3[%c0_4, %c0_5] : memref<1x128xf32, #tpu.memory_space<vmem>>, vector<1x128xf32>
    %7 = vector.broadcast %6 : vector<1x128xf32> to vector<16x128xf32>
    %8 = arith.addf %5, %7 : vector<16x128xf32>
    %cst = arith.constant 0.000000e+00 : f32
    %9 = vector.broadcast %cst : f32 to vector<16x128xf32>
    %10 = arith.maximumf %8, %9 : vector<16x128xf32>
    %cst_6 = arith.constant 0.000000e+00 : f32
    %11 = vector.broadcast %cst_6 : f32 to vector<1x128xf32>
    %c0_7 = arith.constant 0 : index
    %c0_8 = arith.constant 0 : index
    %12 = vector.load %arg8[%c0_7, %c0_8] : memref<18x128xf32, #tpu.memory_space<vmem>>, vector<1x128xf32>
    tpu.vector_store %arg8[%c0_7, %c0_8], %11 {strides = array<i32>} : memref<18x128xf32, #tpu.memory_space<vmem>>, vector<1x128xf32>,
    %c17 = arith.constant 17 : index
    %c0_9 = arith.constant 0 : index
    %13 = vector.load %arg8[%c17, %c0_9] : memref<18x128xf32, #tpu.memory_space<vmem>>, vector<1x128xf32>
    tpu.vector_store %arg8[%c17, %c0_9], %11 {strides = array<i32>} : memref<18x128xf32, #tpu.memory_space<vmem>>, vector<1x128xf32>,
    %c1 = arith.constant 1 : index
    %c0_10 = arith.constant 0 : index
    %14 = vector.load %arg8[%c1, %c0_10] : memref<18x128xf32, #tpu.memory_space<vmem>>, vector<16x128xf32>
    tpu.vector_store %arg8[%c1, %c0_10], %10 {strides = array<i32>} : memref<18x128xf32, #tpu.memory_space<vmem>>, vector<16x128xf32>,
    %c0_11 = arith.constant 0 : index
    %c0_12 = arith.constant 0 : index
    %15 = vector.load %arg8[%c0_11, %c0_12] : memref<18x128xf32, #tpu.memory_space<vmem>>, vector<16x128xf32>
    %16 = arith.truncf %15 : vector<16x128xf32> to vector<16x128xbf16>
    %c0_13 = arith.constant 0 : index
    %c0_14 = arith.constant 0 : index
    %c0_15 = arith.constant 0 : index
    %17 = vector.load %arg4[%c0_13, %c0_14, %c0_15] : memref<3x128x128xbf16, #tpu.memory_space<vmem>>, vector<1x128x128xbf16>
    %18 = vector.shape_cast %17 : vector<1x128x128xbf16> to vector<128x128xbf16>
    %cst_16 = arith.constant dense<0.000000e+00> : vector<16x128xf32>
    %19 = tpu.matmul %16, %18, %cst_16 {dimension_numbers = #tpu.dot_dimension_numbers<[1], [0], [0], [1], [0, 0, 1, 1], [], []>} : vector<16x128xbf16>, vector<128x128xbf16>, vector<16x128xf32> -> vector<16x128xf32>
    %c1_17 = arith.constant 1 : index
    %c0_18 = arith.constant 0 : index
    %20 = vector.load %arg8[%c1_17, %c0_18] : memref<18x128xf32, #tpu.memory_space<vmem>>, vector<16x128xf32>
    %21 = arith.truncf %20 : vector<16x128xf32> to vector<16x128xbf16>
    %c1_19 = arith.constant 1 : index
    %c0_20 = arith.constant 0 : index
    %c0_21 = arith.constant 0 : index
    %22 = vector.load %arg4[%c1_19, %c0_20, %c0_21] : memref<3x128x128xbf16, #tpu.memory_space<vmem>>, vector<1x128x128xbf16>
    %23 = vector.shape_cast %22 : vector<1x128x128xbf16> to vector<128x128xbf16>
    %cst_22 = arith.constant dense<0.000000e+00> : vector<16x128xf32>
    %24 = tpu.matmul %21, %23, %cst_22 {dimension_numbers = #tpu.dot_dimension_numbers<[1], [0], [0], [1], [0, 0, 1, 1], [], []>} : vector<16x128xbf16>, vector<128x128xbf16>, vector<16x128xf32> -> vector<16x128xf32>
    %25 = arith.addf %19, %24 : vector<16x128xf32>
    %c2 = arith.constant 2 : index
    %c0_23 = arith.constant 0 : index
    %26 = vector.load %arg8[%c2, %c0_23] : memref<18x128xf32, #tpu.memory_space<vmem>>, vector<16x128xf32>
    %27 = arith.truncf %26 : vector<16x128xf32> to vector<16x128xbf16>
    %c2_24 = arith.constant 2 : index
    %c0_25 = arith.constant 0 : index
    %c0_26 = arith.constant 0 : index
    %28 = vector.load %arg4[%c2_24, %c0_25, %c0_26] : memref<3x128x128xbf16, #tpu.memory_space<vmem>>, vector<1x128x128xbf16>
    %29 = vector.shape_cast %28 : vector<1x128x128xbf16> to vector<128x128xbf16>
    %cst_27 = arith.constant dense<0.000000e+00> : vector<16x128xf32>
    %30 = tpu.matmul %27, %29, %cst_27 {dimension_numbers = #tpu.dot_dimension_numbers<[1], [0], [0], [1], [0, 0, 1, 1], [], []>} : vector<16x128xbf16>, vector<128x128xbf16>, vector<16x128xf32> -> vector<16x128xf32>
    %31 = arith.addf %25, %30 : vector<16x128xf32>
    %c0_28 = arith.constant 0 : index
    %c0_29 = arith.constant 0 : index
    %c0_30 = arith.constant 0 : index
    %32 = vector.load %arg5[%c0_28, %c0_29, %c0_30] : memref<1x16x128xf32, #tpu.memory_space<vmem>>, vector<1x16x128xf32>
    %33 = vector.shape_cast %32 : vector<1x16x128xf32> to vector<16x128xf32>
    %34 = vector.shape_cast %31 : vector<16x128xf32> to vector<1x16x128xf32>
    tpu.vector_store %arg5[%c0_28, %c0_29, %c0_30], %34 {strides = array<i32>} : memref<1x16x128xf32, #tpu.memory_space<vmem>>, vector<1x16x128xf32>,
    %cst_31 = arith.constant dense<0.000000e+00> : vector<128xf32>
    %35 = vector.multi_reduction <add>, %31, %cst_31 [0] : vector<16x128xf32> to vector<128xf32>
    %36 = vector.shape_cast %35 : vector<128xf32> to vector<1x128xf32>
    %c0_32 = arith.constant 0 : index
    %c0_33 = arith.constant 0 : index
    %c0_34 = arith.constant 0 : index
    %37 = vector.load %arg6[%c0_32, %c0_33, %c0_34] : memref<1x1x128xf32, #tpu.memory_space<vmem>>, vector<1x1x128xf32>
    %38 = vector.shape_cast %37 : vector<1x1x128xf32> to vector<1x128xf32>
    %39 = vector.shape_cast %36 : vector<1x128xf32> to vector<1x1x128xf32>
    tpu.vector_store %arg6[%c0_32, %c0_33, %c0_34], %39 {strides = array<i32>} : memref<1x1x128xf32, #tpu.memory_space<vmem>>, vector<1x1x128xf32>,
    %40 = arith.mulf %31, %31 : vector<16x128xf32>
    %cst_35 = arith.constant dense<0.000000e+00> : vector<128xf32>
    %41 = vector.multi_reduction <add>, %40, %cst_35 [0] : vector<16x128xf32> to vector<128xf32>
    %42 = vector.shape_cast %41 : vector<128xf32> to vector<1x128xf32>
    %c0_36 = arith.constant 0 : index
    %c0_37 = arith.constant 0 : index
    %c0_38 = arith.constant 0 : index
    %43 = vector.load %arg7[%c0_36, %c0_37, %c0_38] : memref<1x1x128xf32, #tpu.memory_space<vmem>>, vector<1x1x128xf32>
    %44 = vector.shape_cast %43 : vector<1x1x128xf32> to vector<1x128xf32>
    %45 = vector.shape_cast %42 : vector<1x128xf32> to vector<1x1x128xf32>
    tpu.vector_store %arg7[%c0_36, %c0_37, %c0_38], %45 {strides = array<i32>} : memref<1x1x128xf32, #tpu.memory_space<vmem>>, vector<1x1x128xf32>,
    return
  }
  func.func @transform_0(%arg0: i32) -> (i32, i32, i32) {
    %c0_i32 = arith.constant 0 : i32
    %c0_i32_0 = arith.constant 0 : i32
    %c0_i32_1 = arith.constant 0 : i32
    return %arg0, %c0_i32, %c0_i32_0 : i32, i32, i32
  }
  func.func @transform_1(%arg0: i32) -> (i32, i32) {
    %c0_i32 = arith.constant 0 : i32
    %c0_i32_0 = arith.constant 0 : i32
    %c0_i32_1 = arith.constant 0 : i32
    return %c0_i32, %c0_i32_0 : i32, i32
  }
  func.func @transform_2(%arg0: i32) -> (i32, i32) {
    %c0_i32 = arith.constant 0 : i32
    %c0_i32_0 = arith.constant 0 : i32
    %c0_i32_1 = arith.constant 0 : i32
    return %c0_i32, %c0_i32_0 : i32, i32
  }
  func.func @transform_3(%arg0: i32) -> (i32, i32, i32) {
    %c0_i32 = arith.constant 0 : i32
    %c0_i32_0 = arith.constant 0 : i32
    %c0_i32_1 = arith.constant 0 : i32
    %c0_i32_2 = arith.constant 0 : i32
    return %c0_i32, %c0_i32_0, %c0_i32_1 : i32, i32, i32
  }
  func.func @transform_4(%arg0: i32) -> (i32, i32, i32) {
    %c0_i32 = arith.constant 0 : i32
    %c0_i32_0 = arith.constant 0 : i32
    %c0_i32_1 = arith.constant 0 : i32
    return %arg0, %c0_i32, %c0_i32_0 : i32, i32, i32
  }
  func.func @transform_5(%arg0: i32) -> (i32, i32, i32) {
    %c0_i32 = arith.constant 0 : i32
    %c0_i32_0 = arith.constant 0 : i32
    %c0_i32_1 = arith.constant 0 : i32
    return %arg0, %c0_i32, %c0_i32_0 : i32, i32, i32
  }
  func.func @transform_6(%arg0: i32) -> (i32, i32, i32) {
    %c0_i32 = arith.constant 0 : i32
    %c0_i32_0 = arith.constant 0 : i32
    %c0_i32_1 = arith.constant 0 : i32
    return %arg0, %c0_i32, %c0_i32_0 : i32, i32, i32
  }
}

module attributes {stable_mosaic.version = 11 : i64} {
  func.func @_bn_relu_kernel(%arg0: i32, %arg1: memref<16x128xf32, #tpu.memory_space<vmem>>, %arg2: memref<1x128xf32, #tpu.memory_space<vmem>>, %arg3: memref<1x128xf32, #tpu.memory_space<vmem>>, %arg4: memref<16x128xf32, #tpu.memory_space<vmem>>) attributes {dimension_semantics = [#tpu.dimension_semantics<parallel>], iteration_bounds = array<i64: 2>, scalar_prefetch = 0 : i64, scratch_operands = 0 : i64, tpu.core_type = #tpu.core_type<tc>, window_params = [{transform_indices = @transform_0, window_bounds = array<i64: 16, 128>}, {pipeline_mode = #tpu.pipeline_mode<synchronous>, transform_indices = @transform_1, window_bounds = array<i64: 1, 128>}, {pipeline_mode = #tpu.pipeline_mode<synchronous>, transform_indices = @transform_2, window_bounds = array<i64: 1, 128>}, {transform_indices = @transform_3, window_bounds = array<i64: 16, 128>}]} {
    %c0 = arith.constant 0 : index
    %c0_0 = arith.constant 0 : index
    %0 = vector.load %arg1[%c0, %c0_0] : memref<16x128xf32, #tpu.memory_space<vmem>>, vector<16x128xf32>
    %c0_1 = arith.constant 0 : index
    %c0_2 = arith.constant 0 : index
    %1 = vector.load %arg2[%c0_1, %c0_2] : memref<1x128xf32, #tpu.memory_space<vmem>>, vector<1x128xf32>
    %2 = vector.broadcast %1 : vector<1x128xf32> to vector<16x128xf32>
    %3 = arith.mulf %0, %2 : vector<16x128xf32>
    %c0_3 = arith.constant 0 : index
    %c0_4 = arith.constant 0 : index
    %4 = vector.load %arg3[%c0_3, %c0_4] : memref<1x128xf32, #tpu.memory_space<vmem>>, vector<1x128xf32>
    %5 = vector.broadcast %4 : vector<1x128xf32> to vector<16x128xf32>
    %6 = arith.addf %3, %5 : vector<16x128xf32>
    %cst = arith.constant 0.000000e+00 : f32
    %7 = vector.broadcast %cst : f32 to vector<16x128xf32>
    %8 = arith.maximumf %6, %7 : vector<16x128xf32>
    %c0_5 = arith.constant 0 : index
    %c0_6 = arith.constant 0 : index
    %9 = vector.load %arg4[%c0_5, %c0_6] : memref<16x128xf32, #tpu.memory_space<vmem>>, vector<16x128xf32>
    tpu.vector_store %arg4[%c0_5, %c0_6], %8 {strides = array<i32>} : memref<16x128xf32, #tpu.memory_space<vmem>>, vector<16x128xf32>,
    return
  }
  func.func @transform_0(%arg0: i32) -> (i32, i32) {
    %c0_i32 = arith.constant 0 : i32
    %c0_i32_0 = arith.constant 0 : i32
    return %arg0, %c0_i32 : i32, i32
  }
  func.func @transform_1(%arg0: i32) -> (i32, i32) {
    %c0_i32 = arith.constant 0 : i32
    %c0_i32_0 = arith.constant 0 : i32
    %c0_i32_1 = arith.constant 0 : i32
    return %c0_i32, %c0_i32_0 : i32, i32
  }
  func.func @transform_2(%arg0: i32) -> (i32, i32) {
    %c0_i32 = arith.constant 0 : i32
    %c0_i32_0 = arith.constant 0 : i32
    %c0_i32_1 = arith.constant 0 : i32
    return %c0_i32, %c0_i32_0 : i32, i32
  }
  func.func @transform_3(%arg0: i32) -> (i32, i32) {
    %c0_i32 = arith.constant 0 : i32
    %c0_i32_0 = arith.constant 0 : i32
    return %arg0, %c0_i32 : i32, i32
  }
}

</mosaic_0001>

<llo_original>
// kernel: tile.28
$region0: #{tile.28}
  #allocation0 [shape = 's32[1]{0}', space=sflag, size = 0x4, scoped, tag = 'scoped memory for tile.28']
  %s0 = inlined_call_operand.vmem [shape: f32[8], index: 0, kind: input, shape index: {}]
  %s1 = inlined_call_operand.vmem [shape: f32[16,8], index: 1, kind: output, shape index: {}]
  // Predicated region
  $region2: #{tile.28} parent=0 // pred_check
    _
  $region3: #{tile.28} parent=0 // pred_check_branch
    %3 = sbr.rel (0) target = $region5
  $region4: #{tile.28} parent=0 // pred_region
    _
  $region5: #{tile.28} parent=0 // pred_fallthru
    _
  %v4 = vld [vmem:[%s0] ss:$0 sm:$0xff]
  %5 = vst [vmem:[%s1] sm:$0xff] %v4
  %s6 = scalar_lea.vmem %s1, 8
  %7 = vst [vmem:[%s6] sm:$0xff] %v4

// kernel: tile.29
$region0: #{tile.29}
  %s0 = inlined_call_operand.vmem [shape: f32[16,8], index: 0, kind: input, shape index: {}]
  %s1 = inlined_call_operand.vmem [shape: f32[1,128], index: 1, kind: output, shape index: {}]
  $region1: #{tile.29} parent=0
    #allocation0 [shape = 'u8[4096]{0}', space=vmem, size = 0x1000, scoped, tag = 'scoped mem for output reshape']
    %v2 = vld [vmem:[%s0] sm:$0x1]
    %vm3 = vcmask 64512
    %4 = vst.msk [vmem:[#allocation0] sm:$0x1] %vm3, %v2
    %s5 = scalar_lea.vmem %s0, 15
    %v6 = vld [vmem:[%s5] sm:$0x1]
    %7 = vrot.lane.b32.xlu0 %v6, 120
    %v8 = vpop.permute.xlu0 %7
    %vm9 = vcmask 1048512
    %10 = vst.msk [vmem:[#allocation0] sm:$0x1] %vm9, %v8
    %s11 = scalar_lea.vmem %s0, 14
    %v12 = vld [vmem:[%s11] sm:$0x1]
    %13 = vrot.lane.b32.xlu0 %v12, 112
    %v14 = vpop.permute.xlu0 %13
    %vm15 = vcmask 982912
    %16 = vst.msk [vmem:[#allocation0] sm:$0x1] %vm15, %v14
    %s17 = scalar_lea.vmem %s0, 13
    %v18 = vld [vmem:[%s17] sm:$0x1]
    %19 = vrot.lane.b32.xlu0 %v18, 104
    %v20 = vpop.permute.xlu0 %19
    %vm21 = vcmask 917312
    %22 = vst.msk [vmem:[#allocation0] sm:$0x1] %vm21, %v20
    %s23 = scalar_lea.vmem %s0, 12
    %v24 = vld [vmem:[%s23] sm:$0x1]
    %25 = vrot.lane.b32.xlu0 %v24, 96
    %v26 = vpop.permute.xlu0 %25
    %vm27 = vcmask 851712
    %28 = vst.msk [vmem:[#allocation0] sm:$0x1] %vm27, %v26
    %s29 = scalar_lea.vmem %s0, 11
    %v30 = vld [vmem:[%s29] sm:$0x1]
    %31 = vrot.lane.b32.xlu0 %v30, 88
    %v32 = vpop.permute.xlu0 %31
    %vm33 = vcmask 786112
    %34 = vst.msk [vmem:[#allocation0] sm:$0x1] %vm33, %v32
    %s35 = scalar_lea.vmem %s0, 10
    %v36 = vld [vmem:[%s35] sm:$0x1]
    %37 = vrot.lane.b32.xlu0 %v36, 80
    %v38 = vpop.permute.xlu0 %37
    %vm39 = vcmask 720512
    %40 = vst.msk [vmem:[#allocation0] sm:$0x1] %vm39, %v38
    %s41 = scalar_lea.vmem %s0, 9
    %v42 = vld [vmem:[%s41] sm:$0x1]
    %43 = vrot.lane.b32.xlu0 %v42, 72
    %v44 = vpop.permute.xlu0 %43
    %vm45 = vcmask 654912
    %46 = vst.msk [vmem:[#allocation0] sm:$0x1] %vm45, %v44
    %s47 = scalar_lea.vmem %s0, 8
    %v48 = vld [vmem:[%s47] sm:$0x1]
    %49 = vrot.lane.b32.xlu0 %v48, 64
    %v50 = vpop.permute.xlu0 %49
    %vm51 = vcmask 589312
    %52 = vst.msk [vmem:[#allocation0] sm:$0x1] %vm51, %v50
    %s53 = scalar_lea.vmem %s0, 7
    %v54 = vld [vmem:[%s53] sm:$0x1]
    %55 = vrot.lane.b32.xlu0 %v54, 56
    %v56 = vpop.permute.xlu0 %55
    %vm57 = vcmask 523712
    %58 = vst.msk [vmem:[#allocation0] sm:$0x1] %vm57, %v56
    %s59 = scalar_lea.vmem %s0, 6
    %v60 = vld [vmem:[%s59] sm:$0x1]
    %61 = vrot.lane.b32.xlu0 %v60, 48
    %v62 = vpop.permute.xlu0 %61
    %vm63 = vcmask 458112
    %64 = vst.msk [vmem:[#allocation0] sm:$0x1] %vm63, %v62
    %s65 = scalar_lea.vmem %s0, 5
    %v66 = vld [vmem:[%s65] sm:$0x1]
    %67 = vrot.lane.b32.xlu0 %v66, 40
    %v68 = vpop.permute.xlu0 %67
    %vm69 = vcmask 392512
    %70 = vst.msk [vmem:[#allocation0] sm:$0x1] %vm69, %v68
    %s71 = scalar_lea.vmem %s0, 4
    %v72 = vld [vmem:[%s71] sm:$0x1]
    %73 = vrot.lane.b32.xlu0 %v72, 32
    %v74 = vpop.permute.xlu0 %73
    %vm75 = vcmask 326912
    %76 = vst.msk [vmem:[#allocation0] sm:$0x1] %vm75, %v74
    %s77 = scalar_lea.vmem %s0, 3
    %v78 = vld [vmem:[%s77] sm:$0x1]
    %79 = vrot.lane.b32.xlu0 %v78, 24
    %v80 = vpop.permute.xlu0 %79
    %vm81 = vcmask 261312
    %82 = vst.msk [vmem:[#allocation0] sm:$0x1] %vm81, %v80
    %s83 = scalar_lea.vmem %s0, 2
    %v84 = vld [vmem:[%s83] sm:$0x1]
    %85 = vrot.lane.b32.xlu0 %v84, 16
    %v86 = vpop.permute.xlu0 %85
    %vm87 = vcmask 195712
    %88 = vst.msk [vmem:[#allocation0] sm:$0x1] %vm87, %v86
    %s89 = scalar_lea.vmem %s0, 1
    %v90 = vld [vmem:[%s89] sm:$0x1]
    %91 = vrot.lane.b32.xlu0 %v90, 8
    %v92 = vpop.permute.xlu0 %91
    %vm93 = vcmask 130112
    %94 = vst.msk [vmem:[#allocation0] sm:$0x1] %vm93, %v92
    %s96 = ssub.s32 2, 1
    %v97 = vld [vmem:[#allocation0] sm:%s96]
    %s99 = ssub.s32 2, 1
    %100 = vst [vmem:[%s1] sm:%s99] %v97

// kernel: unet_block.3
$region0: #{unet_block.3}
  #allocation0 [shape = 'u32[]', space=smem, size = 0x4, offset = 0x4, fixed_abs, tag = 'smem constant byte address 0x4 - core index']
  #allocation1 [shape = 'u32[72,128]{1,0:T(1,128)}', space=vmem, size = 0x9000, scoped, tag = 'internal scratch']
  #allocation2 [shape = 'f32[18,64]{1,0:T(8,128)}', space=vmem, size = 0x3000, scoped, tag = 'scratch operand']
  %s0 = inlined_call_operand.vmem [shape: bf16[2,16,64], index: 0, kind: input, shape index: {}]
  %s1 = inlined_call_operand.vmem [shape: f32[1,64], index: 1, kind: input, shape index: {}]
  %s2 = inlined_call_operand.vmem [shape: f32[1,64], index: 2, kind: input, shape index: {}]
  %s3 = inlined_call_operand.vmem [shape: bf16[3,64,128], index: 3, kind: input, shape index: {}]
  %s4 = inlined_call_operand.vmem [shape: bf16[2,16,128], index: 4, kind: output, shape index: {0}]
  %s5 = inlined_call_operand.vmem [shape: f32[2,1,128], index: 5, kind: output, shape index: {1}]
  %s6 = inlined_call_operand.vmem [shape: f32[2,1,128], index: 6, kind: output, shape index: {2}]
  %7 = xla_tuple %s4, %s5, %s6
  %s8 = sld [smem:[#allocation0]]
  $region65: #{unet_block.3} parent=0
    _
  %s10 = ssub.s32 1, %s8
  %s11 = scalar_select 0, %s10, %s8
  loop: start=0, step=1, limit=4
  $region2: #{unet_block.3} parent=0 // loop_pre_header
    _
  $region3: #{unet_block.3} parent=0 // loop_header
    %s13 = sphi 0, %s17
    %p14 = scmp.ge.s32.totalorder %s13, 4
    %s23 = sphi 0, %s25
    %s26 = sphi 0, %s23
    %s27 = sphi 0, %s26
    %s43 = sphi 0, %s27
    %s47 = sphi 0, %s47
    %s49 = sphi 0, %s47
    %s50 = sphi 0, %s49
    %s64 = sphi 0, %s50
    %s68 = sphi 0, %s68
    %s70 = sphi 0, %s68
    %s71 = sphi 0, %s70
    %s85 = sphi 0, %s71
    %s89 = sphi 0, %s89
    %s91 = sphi 0, %s89
    %s92 = sphi 0, %s91
    %s106 = sphi 0, %s92
    %s112 = sphi 0, %s114
    %s115 = sphi 0, %s112
    %s116 = sphi 0, %s115
    %s132 = sphi 0, %s116
    %s138 = sphi 0, %s140
    %s141 = sphi 0, %s138
    %s142 = sphi 0, %s141
    %s158 = sphi 0, %s142
    %s164 = sphi 0, %s166
    %s167 = sphi 0, %s164
    %s168 = sphi 0, %s167
    %s184 = sphi 0, %s168
  $region4: #{unet_block.3} parent=0 // loop_header_branch
    %16 = sbr.rel (%p14) target = $region8
  $region5: #{unet_block.3} parent=0 // loop_body
    %s18 = ssub.s32 %s13, 1
    %s19 = ssub.s32 %s13, 2
    %s20 = sadd.s32 %s13, 1
    %s21 = ssub.s32 %s13, %s20
    %p22 = scmp.eq.s32.totalorder %s21, 0
    %s24 = sadd.s32 %s23, 1
    %s25 = scalar_select %p22, %s23, %s24
    %p28 = pneg %p22
    %p29 = scmp.eq.s32.totalorder %s13, 1
    %p30 = por %p28, %p29
    %p31 = scmp.ne.s32.totalorder %s23, %s26
    %p32 = scmp.eq.s32.totalorder %s13, 0
    %p33 = por %p31, %p32
    %p34 = scmp.ne.s32.totalorder %s23, %s26
    %p35 = scmp.eq.s32.totalorder %s18, 1
    %p36 = por %p34, %p35
    %p37 = scmp.ne.s32.totalorder %s26, %s27
    %p38 = scmp.eq.s32.totalorder %s18, 0
    %p39 = por %p37, %p38
    %p40 = scmp.ne.s32.totalorder %s26, %s27
    %p41 = scmp.eq.s32.totalorder %s19, 1
    %p42 = por %p40, %p41
    %p44 = scmp.ne.s32.totalorder %s27, %s43
    %p45 = scmp.eq.s32.totalorder %s19, 0
    %p46 = por %p44, %p45
    %s48 = sadd.s32 %s47, 1
    %p51 = scmp.eq.s32.totalorder %s13, 1
    %p52 = scmp.ne.s32.totalorder %s47, %s49
    %p53 = scmp.eq.s32.totalorder %s13, 0
    %p54 = por %p52, %p53
    %p55 = scmp.ne.s32.totalorder %s47, %s49
    %p56 = scmp.eq.s32.totalorder %s18, 1
    %p57 = por %p55, %p56
    %p58 = scmp.ne.s32.totalorder %s49, %s50
    %p59 = scmp.eq.s32.totalorder %s18, 0
    %p60 = por %p58, %p59
    %p61 = scmp.ne.s32.totalorder %s49, %s50
    %p62 = scmp.eq.s32.totalorder %s19, 1
    %p63 = por %p61, %p62
    %p65 = scmp.ne.s32.totalorder %s50, %s64
    %p66 = scmp.eq.s32.totalorder %s19, 0
    %p67 = por %p65, %p66
    %s69 = sadd.s32 %s68, 1
    %p72 = scmp.eq.s32.totalorder %s13, 1
    %p73 = scmp.ne.s32.totalorder %s68, %s70
    %p74 = scmp.eq.s32.totalorder %s13, 0
    %p75 = por %p73, %p74
    %p76 = scmp.ne.s32.totalorder %s68, %s70
    %p77 = scmp.eq.s32.totalorder %s18, 1
    %p78 = por %p76, %p77
    %p79 = scmp.ne.s32.totalorder %s70, %s71
    %p80 = scmp.eq.s32.totalorder %s18, 0
    %p81 = por %p79, %p80
    %p82 = scmp.ne.s32.totalorder %s70, %s71
    %p83 = scmp.eq.s32.totalorder %s19, 1
    %p84 = por %p82, %p83
    %p86 = scmp.ne.s32.totalorder %s71, %s85
    %p87 = scmp.eq.s32.totalorder %s19, 0
    %p88 = por %p86, %p87
    %s90 = sadd.s32 %s89, 1
    %p93 = scmp.eq.s32.totalorder %s13, 1
    %p94 = scmp.ne.s32.totalorder %s89, %s91
    %p95 = scmp.eq.s32.totalorder %s13, 0
    %p96 = por %p94, %p95
    %p97 = scmp.ne.s32.totalorder %s89, %s91
    %p98 = scmp.eq.s32.totalorder %s18, 1
    %p99 = por %p97, %p98
    %p100 = scmp.ne.s32.totalorder %s91, %s92
    %p101 = scmp.eq.s32.totalorder %s18, 0
    %p102 = por %p100, %p101
    %p103 = scmp.ne.s32.totalorder %s91, %s92
    %p104 = scmp.eq.s32.totalorder %s19, 1
    %p105 = por %p103, %p104
    %p107 = scmp.ne.s32.totalorder %s92, %s106
    %p108 = scmp.eq.s32.totalorder %s19, 0
    %p109 = por %p107, %p108
    %s110 = ssub.s32 %s13, %s20
    %p111 = scmp.eq.s32.totalorder %s110, 0
    %s113 = sadd.s32 %s112, 1
    %s114 = scalar_select %p111, %s112, %s113
    %p117 = pneg %p111
    %p118 = scmp.eq.s32.totalorder %s13, 1
    %p119 = por %p117, %p118
    %p120 = scmp.ne.s32.totalorder %s112, %s115
    %p121 = scmp.eq.s32.totalorder %s13, 0
    %p122 = por %p120, %p121
    %p123 = scmp.ne.s32.totalorder %s112, %s115
    %p124 = scmp.eq.s32.totalorder %s18, 1
    %p125 = por %p123, %p124
    %p126 = scmp.ne.s32.totalorder %s115, %s116
    %p127 = scmp.eq.s32.totalorder %s18, 0
    %p128 = por %p126, %p127
    %p129 = scmp.ne.s32.totalorder %s115, %s116
    %p130 = scmp.eq.s32.totalorder %s19, 1
    %p131 = por %p129, %p130
    %p133 = scmp.ne.s32.totalorder %s116, %s132
    %p134 = scmp.eq.s32.totalorder %s19, 0
    %p135 = por %p133, %p134
    %s136 = ssub.s32 %s13, %s20
    %p137 = scmp.eq.s32.totalorder %s136, 0
    %s139 = sadd.s32 %s138, 1
    %s140 = scalar_select %p137, %s138, %s139
    %p143 = pneg %p137
    %p144 = scmp.eq.s32.totalorder %s13, 1
    %p145 = por %p143, %p144
    %p146 = scmp.ne.s32.totalorder %s138, %s141
    %p147 = scmp.eq.s32.totalorder %s13, 0
    %p148 = por %p146, %p147
    %p149 = scmp.ne.s32.totalorder %s138, %s141
    %p150 = scmp.eq.s32.totalorder %s18, 1
    %p151 = por %p149, %p150
    %p152 = scmp.ne.s32.totalorder %s141, %s142
    %p153 = scmp.eq.s32.totalorder %s18, 0
    %p154 = por %p152, %p153
    %p155 = scmp.ne.s32.totalorder %s141, %s142
    %p156 = scmp.eq.s32.totalorder %s19, 1
    %p157 = por %p155, %p156
    %p159 = scmp.ne.s32.totalorder %s142, %s158
    %p160 = scmp.eq.s32.totalorder %s19, 0
    %p161 = por %p159, %p160
    %s162 = ssub.s32 %s13, %s20
    %p163 = scmp.eq.s32.totalorder %s162, 0
    %s165 = sadd.s32 %s164, 1
    %s166 = scalar_select %p163, %s164, %s165
    %p169 = pneg %p163
    %p170 = scmp.eq.s32.totalorder %s13, 1
    %p171 = por %p169, %p170
    %p172 = scmp.ne.s32.totalorder %s164, %s167
    %p173 = scmp.eq.s32.totalorder %s13, 0
    %p174 = por %p172, %p173
    %p175 = scmp.ne.s32.totalorder %s164, %s167
    %p176 = scmp.eq.s32.totalorder %s18, 1
    %p177 = por %p175, %p176
    %p178 = scmp.ne.s32.totalorder %s167, %s168
    %p179 = scmp.eq.s32.totalorder %s18, 0
    %p180 = por %p178, %p179
    %p181 = scmp.ne.s32.totalorder %s167, %s168
    %p182 = scmp.eq.s32.totalorder %s19, 1
    %p183 = por %p181, %p182
    %p185 = scmp.ne.s32.totalorder %s168, %s184
    %p186 = scmp.eq.s32.totalorder %s19, 0
    %p187 = por %p185, %p186
    %p188 = scmp.le.s32.totalorder 1, %s13
    %p189 = scmp.lt.s32.totalorder %s13, 3
    %p190 = pnand %p188, %p189
    %p191 = pneg %p190
    // Predicated region
    $region9: #{unet_block.3} parent=5 // pred_check
      _
    $region10: #{unet_block.3} parent=5 // pred_check_branch
      %193 = sbr.rel (%p190) target = $region12
    $region11: #{unet_block.3} parent=5 // pred_region
      %s194 = ssub.s32 %s13, 1
      // Predicated region
      $region13: #{unet_block.3} parent=11 // pred_check
        %p195 = pneg %p60
      $region14: #{unet_block.3} parent=11 // pred_check_branch
        %197 = sbr.rel (%p195) target = $region16
      $region15: #{unet_block.3} parent=11 // pred_region
        _
      $region16: #{unet_block.3} parent=11 // pred_fallthru
        _
      // Predicated region
      $region17: #{unet_block.3} parent=11 // pred_check
        %p198 = pneg %p81
      $region18: #{unet_block.3} parent=11 // pred_check_branch
        %200 = sbr.rel (%p198) target = $region20
      $region19: #{unet_block.3} parent=11 // pred_region
        _
      $region20: #{unet_block.3} parent=11 // pred_fallthru
        _
      // Predicated region
      $region21: #{unet_block.3} parent=11 // pred_check
        %p201 = pneg %p102
      $region22: #{unet_block.3} parent=11 // pred_check_branch
        %203 = sbr.rel (%p201) target = $region24
      $region23: #{unet_block.3} parent=11 // pred_region
        _
      $region24: #{unet_block.3} parent=11 // pred_fallthru
        _
    $region12: #{unet_block.3} parent=5 // pred_fallthru
      _
    %p204 = scmp.lt.s32.totalorder %s13, 2
    // Predicated region
    $region25: #{unet_block.3} parent=5 // pred_check
      %p205 = pneg %p204
    $region26: #{unet_block.3} parent=5 // pred_check_branch
      %207 = sbr.rel (%p205) target = $region28
    $region27: #{unet_block.3} parent=5 // pred_region
      // Predicated region
      $region29: #{unet_block.3} parent=27 // pred_check
        %p208 = pneg %p33
      $region30: #{unet_block.3} parent=27 // pred_check_branch
        %210 = sbr.rel (%p208) target = $region32
      $region31: #{unet_block.3} parent=27 // pred_region
        %p211 = scmp.lt.s32.totalorder %s13, 1
        %s212 = scalar_select %p211, %s13, 1
        %s213 = smul.addr %s212, 2
        %s214 = smul.addr %s213, 4
        %s215 = scalar_lea.vmem %s0, %s214
      $region32: #{unet_block.3} parent=27 // pred_fallthru
        _
    $region28: #{unet_block.3} parent=5 // pred_fallthru
      _
    %p216 = scmp.le.s32.totalorder 1, %s13
    %p217 = scmp.lt.s32.totalorder %s13, 3
    %p218 = pnand %p216, %p217
    %p219 = pneg %p218
    // Predicated region
    $region33: #{unet_block.3} parent=5 // pred_check
      _
    $region34: #{unet_block.3} parent=5 // pred_check_branch
      %221 = sbr.rel (%p218) target = $region36
    $region35: #{unet_block.3} parent=5 // pred_region
      %s222 = ssub.s32 %s13, 1
      %p223 = scmp.lt.s32.totalorder %s18, 1
      %s224 = scalar_select %p223, %s18, 1
      %s225 = smul.addr %s224, 2
      %s226 = smul.addr %s225, 4
      %s227 = scalar_lea.vmem %s0, %s226
      %p228 = pneg %p39
      %p229 = pneg %p36
      %p230 = pneg %p60
      %p231 = pneg %p57
      %p232 = pneg %p81
      %p233 = pneg %p78
      %p234 = pneg %p102
      %p235 = pneg %p99
      %p236 = pneg %p128
      %p237 = pneg %p125
      %p238 = scmp.lt.s32.totalorder %s18, 1
      %s239 = scalar_select %p238, %s18, 1
      %s240 = smul.addr %s239, 2
      %s241 = smul.addr %s240, 4
      %s242 = scalar_lea.vmem %s4, %s241
      %p243 = pneg %p154
      %p244 = pneg %p151
      %p245 = scmp.lt.s32.totalorder %s18, 1
      %s246 = scalar_select %p245, %s18, 1
      %s247 = scalar_lea.vmem %s5, %s246
      %p248 = pneg %p180
      %p249 = pneg %p177
      %p250 = scmp.lt.s32.totalorder %s18, 1
      %s251 = scalar_select %p250, %s18, 1
      %s252 = scalar_lea.vmem %s6, %s251
      %p253 = scmp.lt.s32.totalorder %s18, 1
      %s254 = scalar_select %p253, %s18, 1
      %s255 = smul.addr %s254, 2
      %s256 = smul.addr %s255, 4
      %s257 = scalar_lea.vmem %s0, %s256
      %p258 = scmp.lt.s32.totalorder %s18, 1
      %s259 = scalar_select %p258, %s18, 1
      %s260 = smul.addr %s259, 2
      %s261 = smul.addr %s260, 4
      %s262 = scalar_lea.vmem %s4, %s261
      %p263 = scmp.lt.s32.totalorder %s18, 1
      %s264 = scalar_select %p263, %s18, 1
      %s265 = scalar_lea.vmem %s5, %s264
      %p266 = scmp.lt.s32.totalorder %s18, 1
      %s267 = scalar_select %p266, %s18, 1
      %s268 = scalar_lea.vmem %s6, %s267
      %v270 = vld [vmem:[%s257] sm:$0xf]
      %v271 = vld [vmem:[%s257 + $0x4] sm:$0xf]
      %v272 = vunpack.c.l.bf16 %v270
      %v273 = vunpack.c.l.bf16 %v271
      %vm274 = vcmask 516096
      %275 = vst.msk [vmem:[#allocation2] sm:$0x1] %vm274, 0.0
      %276 = vst.msk [vmem:[#allocation2 + $0x11] sm:$0x1] %vm274, 0.0
      %vm277 = vcmask 523264
      %278 = vst.msk [vmem:[#allocation2 + $0x1] sm:$0xff] %vm277, %v272
      %279 = vst.msk [vmem:[#allocation2 + $0x9] sm:$0xff] %vm277, %v273
      %v280 = vld [vmem:[#allocation2] sm:$0xff]
      %v281 = vld [vmem:[#allocation2 + $0x8] sm:$0xff]
      %v282 = vpack.c.bf16 %v281, %v280
      %v283 = vld [vmem:[%s3] sm:$0xf]
      %v284 = vld [vmem:[%s3 + $0x4] sm:$0xf]
      %v285 = vld [vmem:[%s3 + $0x8] sm:$0xf]
      %v286 = vld [vmem:[%s3 + $0xc] sm:$0xf]
      %v287 = vld [vmem:[%s3 + $0x10] sm:$0xf]
      %v288 = vld [vmem:[%s3 + $0x14] sm:$0xf]
      %v289 = vld [vmem:[%s3 + $0x18] sm:$0xf]
      %v290 = vld [vmem:[%s3 + $0x1c] sm:$0xf]
      %v291 = vld [vmem:[#allocation2 + $0x1] sm:$0xff]
      %v292 = vld [vmem:[#allocation2 + $0x9] sm:$0xff]
      %v293 = vpack.c.bf16 %v292, %v291
      %s294 = scalar_lea.vmem %s3, 32
      %v295 = vld [vmem:[%s294] sm:$0xf]
      %v296 = vld [vmem:[%s294 + $0x4] sm:$0xf]
      %v297 = vld [vmem:[%s294 + $0x8] sm:$0xf]
      %v298 = vld [vmem:[%s294 + $0xc] sm:$0xf]
      %v299 = vld [vmem:[%s294 + $0x10] sm:$0xf]
      %v300 = vld [vmem:[%s294 + $0x14] sm:$0xf]
      %v301 = vld [vmem:[%s294 + $0x18] sm:$0xf]
      %v302 = vld [vmem:[%s294 + $0x1c] sm:$0xf]
      %v311 = vunpack.c.l.b16 %v295
      %v312 = vunpack.c.l.b16 %v296
      %v313 = vunpack.c.l.b16 %v297
      %v314 = vunpack.c.l.b16 %v298
      %v315 = vunpack.c.l.b16 %v299
      %v316 = vunpack.c.l.b16 %v300
      %v317 = vunpack.c.l.b16 %v301
      %v318 = vunpack.c.l.b16 %v302
      %v319 = vpack.c.b16 %v312, %v311
      %v320 = vpack.c.b16 %v314, %v313
      %v321 = vpack.c.b16 %v316, %v315
      %v322 = vpack.c.b16 %v318, %v317
      %v328 = vsel %vm277, %v293, 0
      %330 = vmatpush.bf16.msra.mxu0 0
      %331 = vmatpush.bf16.msra.mxu0 0
      %332 = vmatpush.bf16.msra.mxu0 0
      %333 = vmatpush.bf16.msra.mxu0 0
      %334 = vmatpush.bf16.msra.mxu0 %v322
      %335 = vmatpush.bf16.msra.mxu0 %v321
      %336 = vmatpush.bf16.msra.mxu0 %v320
      %337 = vmatpush.bf16.msra.mxu0 %v319
      %338 = vmatmul.bf16.gmra.mxu0 %v328
      %v339 = vpop.f32.mrf.mxu0
      %v340 = vadd.f32 0.0, %v339
      %v341 = vpop.f32.mrf.mxu0
      %v342 = vadd.f32 0.0, %v341
      %343 = vdwg.mxu0
      %v352 = vunpack.c.l.b16 %v283
      %v353 = vunpack.c.l.b16 %v284
      %v354 = vunpack.c.l.b16 %v285
      %v355 = vunpack.c.l.b16 %v286
      %v356 = vunpack.c.l.b16 %v287
      %v357 = vunpack.c.l.b16 %v288
      %v358 = vunpack.c.l.b16 %v289
      %v359 = vunpack.c.l.b16 %v290
      %v360 = vpack.c.b16 %v353, %v352
      %v361 = vpack.c.b16 %v355, %v354
      %v362 = vpack.c.b16 %v357, %v356
      %v363 = vpack.c.b16 %v359, %v358
      %v369 = vsel %vm277, %v282, 0
      %371 = vmatpush.bf16.msra.mxu0 0
      %372 = vmatpush.bf16.msra.mxu0 0
      %373 = vmatpush.bf16.msra.mxu0 0
      %374 = vmatpush.bf16.msra.mxu0 0
      %375 = vmatpush.bf16.msra.mxu0 %v363
      %376 = vmatpush.bf16.msra.mxu0 %v362
      %377 = vmatpush.bf16.msra.mxu0 %v361
      %378 = vmatpush.bf16.msra.mxu0 %v360
      %379 = vmatmul.bf16.gmra.mxu0 %v369
      %v380 = vpop.f32.mrf.mxu0
      %v381 = vadd.f32 %v340, %v380
      %v382 = vpop.f32.mrf.mxu0
      %v383 = vadd.f32 %v342, %v382
      %384 = vdwg.mxu0
      %v385 = vld [vmem:[#allocation2 + $0x2] sm:$0xff]
      %v386 = vld [vmem:[#allocation2 + $0xa] sm:$0xff]
      %v387 = vpack.c.bf16 %v386, %v385
      %s388 = scalar_lea.vmem %s3, 64
      %v389 = vld [vmem:[%s388] sm:$0xf]
      %v390 = vld [vmem:[%s388 + $0x4] sm:$0xf]
      %v391 = vld [vmem:[%s388 + $0x8] sm:$0xf]
      %v392 = vld [vmem:[%s388 + $0xc] sm:$0xf]
      %v393 = vld [vmem:[%s388 + $0x10] sm:$0xf]
      %v394 = vld [vmem:[%s388 + $0x14] sm:$0xf]
      %v395 = vld [vmem:[%s388 + $0x18] sm:$0xf]
      %v396 = vld [vmem:[%s388 + $0x1c] sm:$0xf]
      %v405 = vunpack.c.l.b16 %v389
      %v406 = vunpack.c.l.b16 %v390
      %v407 = vunpack.c.l.b16 %v391
      %v408 = vunpack.c.l.b16 %v392
      %v409 = vunpack.c.l.b16 %v393
      %v410 = vunpack.c.l.b16 %v394
      %v411 = vunpack.c.l.b16 %v395
      %v412 = vunpack.c.l.b16 %v396
      %v413 = vpack.c.b16 %v406, %v405
      %v414 = vpack.c.b16 %v408, %v407
      %v415 = vpack.c.b16 %v410, %v409
      %v416 = vpack.c.b16 %v412, %v411
      %v422 = vsel %vm277, %v387, 0
      %424 = vmatpush.bf16.msra.mxu0 0
      %425 = vmatpush.bf16.msra.mxu0 0
      %426 = vmatpush.bf16.msra.mxu0 0
      %427 = vmatpush.bf16.msra.mxu0 0
      %428 = vmatpush.bf16.msra.mxu0 %v416
      %429 = vmatpush.bf16.msra.mxu0 %v415
      %430 = vmatpush.bf16.msra.mxu0 %v414
      %431 = vmatpush.bf16.msra.mxu0 %v413
      %432 = vmatmul.bf16.gmra.mxu0 %v422
      %v433 = vpop.f32.mrf.mxu0
      %v434 = vadd.f32 0.0, %v433
      %v435 = vpop.f32.mrf.mxu0
      %v436 = vadd.f32 0.0, %v435
      %437 = vdwg.mxu0
      %v438 = vadd.f32 %v381, %v434
      %v439 = vadd.f32 %v383, %v436
      %v440 = vpack.c.bf16 %v438, %v438
      %v441 = vpack.c.bf16 %v439, %v439
      %442 = vst [vmem:[%s262] sm:$0xf] %v440
      %443 = vst [vmem:[%s262 + $0x4] sm:$0xf] %v441
      %v444 = vadd.f32 %v438, %v439
      %v445 = vrot.slane %v444, 4
      %v446 = vadd.f32 %v444, %v445
      %v447 = vrot.slane %v446, 2
      %v448 = vadd.f32 %v446, %v447
      %v449 = vrot.slane %v448, 1
      %v450 = vadd.f32 %v448, %v449
      %451 = vst [vmem:[%s265] sm:$0x1] %v450
      %v452 = vmul.f32 %v438, %v438
      %v453 = vmul.f32 %v439, %v439
      %v454 = vadd.f32 %v452, %v453
      %v455 = vrot.slane %v454, 4
      %v456 = vadd.f32 %v454, %v455
      %v457 = vrot.slane %v456, 2
      %v458 = vadd.f32 %v456, %v457
      %v459 = vrot.slane %v458, 1
      %v460 = vadd.f32 %v458, %v459
      %461 = vst [vmem:[%s268] sm:$0x1] %v460
      %p462 = scmp.lt.s32.totalorder %s18, 1
      %s463 = scalar_select %p462, %s18, 1
      %s464 = smul.addr %s463, 2
      %s465 = smul.addr %s464, 4
      %s466 = scalar_lea.vmem %s4, %s465
      %p467 = scmp.lt.s32.totalorder %s18, 1
      %s468 = scalar_select %p467, %s18, 1
      %s469 = scalar_lea.vmem %s5, %s468
      %p470 = scmp.lt.s32.totalorder %s18, 1
      %s471 = scalar_select %p470, %s18, 1
      %s472 = scalar_lea.vmem %s6, %s471
      // Predicated region
      $region37: #{unet_block.3} parent=35 // pred_check
        %p473 = pneg %p125
      $region38: #{unet_block.3} parent=35 // pred_check_branch
        %475 = sbr.rel (%p473) target = $region40
      $region39: #{unet_block.3} parent=35 // pred_region
        _
      $region40: #{unet_block.3} parent=35 // pred_fallthru
        _
      // Predicated region
      $region41: #{unet_block.3} parent=35 // pred_check
        %p476 = pneg %p151
      $region42: #{unet_block.3} parent=35 // pred_check_branch
        %478 = sbr.rel (%p476) target = $region44
      $region43: #{unet_block.3} parent=35 // pred_region
        _
      $region44: #{unet_block.3} parent=35 // pred_fallthru
        _
      // Predicated region
      $region45: #{unet_block.3} parent=35 // pred_check
        %p479 = pneg %p177
      $region46: #{unet_block.3} parent=35 // pred_check_branch
        %481 = sbr.rel (%p479) target = $region48
      $region47: #{unet_block.3} parent=35 // pred_region
        _
      $region48: #{unet_block.3} parent=35 // pred_fallthru
        _
    $region36: #{unet_block.3} parent=5 // pred_fallthru
      _
    %p482 = scmp.le.s32.totalorder 2, %s13
    // Predicated region
    $region49: #{unet_block.3} parent=5 // pred_check
      %p483 = pneg %p482
    $region50: #{unet_block.3} parent=5 // pred_check_branch
      %485 = sbr.rel (%p483) target = $region52
    $region51: #{unet_block.3} parent=5 // pred_region
      %s486 = ssub.s32 %s13, 2
      // Predicated region
      $region53: #{unet_block.3} parent=51 // pred_check
        %p487 = pneg %p131
      $region54: #{unet_block.3} parent=51 // pred_check_branch
        %489 = sbr.rel (%p487) target = $region56
      $region55: #{unet_block.3} parent=51 // pred_region
        %p490 = scmp.lt.s32.totalorder %s19, 1
        %s491 = scalar_select %p490, %s19, 1
        %s492 = smul.addr %s491, 2
        %s493 = smul.addr %s492, 4
        %s494 = scalar_lea.vmem %s4, %s493
      $region56: #{unet_block.3} parent=51 // pred_fallthru
        _
      // Predicated region
      $region57: #{unet_block.3} parent=51 // pred_check
        %p495 = pneg %p157
      $region58: #{unet_block.3} parent=51 // pred_check_branch
        %497 = sbr.rel (%p495) target = $region60
      $region59: #{unet_block.3} parent=51 // pred_region
        %p498 = scmp.lt.s32.totalorder %s19, 1
        %s499 = scalar_select %p498, %s19, 1
        %s500 = scalar_lea.vmem %s5, %s499
      $region60: #{unet_block.3} parent=51 // pred_fallthru
        _
      // Predicated region
      $region61: #{unet_block.3} parent=51 // pred_check
        %p501 = pneg %p183
      $region62: #{unet_block.3} parent=51 // pred_check_branch
        %503 = sbr.rel (%p501) target = $region64
      $region63: #{unet_block.3} parent=51 // pred_region
        %p504 = scmp.lt.s32.totalorder %s19, 1
        %s505 = scalar_select %p504, %s19, 1
        %s506 = scalar_lea.vmem %s6, %s505
      $region64: #{unet_block.3} parent=51 // pred_fallthru
        _
    $region52: #{unet_block.3} parent=5 // pred_fallthru
      _
  $region6: #{unet_block.3} parent=0 // loop_footer
    %s17 = sadd.s32 1, %s13
  $region7: #{unet_block.3} parent=0 // loop_footer_branch
    %12 = sbr.rel target = $region3
  $region8: #{unet_block.3} parent=0 // loop_exit
    _

// kernel: unet_block.4
$region0: #{unet_block.4}
  #allocation0 [shape = 'u32[]', space=smem, size = 0x4, offset = 0x4, fixed_abs, tag = 'smem constant byte address 0x4 - core index']
  #allocation1 [shape = 'u32[72,128]{1,0:T(1,128)}', space=vmem, size = 0x9000, scoped, tag = 'internal scratch']
  #allocation2 [shape = 'f32[18,128]{1,0:T(8,128)}', space=vmem, size = 0x3000, scoped, tag = 'scratch operand']
  %s0 = inlined_call_operand.vmem [shape: bf16[2,16,128], index: 0, kind: input, shape index: {}]
  %s1 = inlined_call_operand.vmem [shape: f32[1,128], index: 1, kind: input, shape index: {}]
  %s2 = inlined_call_operand.vmem [shape: f32[1,128], index: 2, kind: input, shape index: {}]
  %s3 = inlined_call_operand.vmem [shape: bf16[3,128,128], index: 3, kind: input, shape index: {}]
  %s4 = inlined_call_operand.vmem [shape: f32[2,16,128], index: 4, kind: output, shape index: {0}]
  %s5 = inlined_call_operand.vmem [shape: f32[2,1,128], index: 5, kind: output, shape index: {1}]
  %s6 = inlined_call_operand.vmem [shape: f32[2,1,128], index: 6, kind: output, shape index: {2}]
  %7 = xla_tuple %s4, %s5, %s6
  %s8 = sld [smem:[#allocation0]]
  $region65: #{unet_block.4} parent=0
    _
  %s10 = ssub.s32 1, %s8
  %s11 = scalar_select 0, %s10, %s8
  loop: start=0, step=1, limit=4
  $region2: #{unet_block.4} parent=0 // loop_pre_header
    _
  $region3: #{unet_block.4} parent=0 // loop_header
    %s13 = sphi 0, %s17
    %p14 = scmp.ge.s32.totalorder %s13, 4
    %s23 = sphi 0, %s25
    %s26 = sphi 0, %s23
    %s27 = sphi 0, %s26
    %s43 = sphi 0, %s27
    %s47 = sphi 0, %s47
    %s49 = sphi 0, %s47
    %s50 = sphi 0, %s49
    %s64 = sphi 0, %s50
    %s68 = sphi 0, %s68
    %s70 = sphi 0, %s68
    %s71 = sphi 0, %s70
    %s85 = sphi 0, %s71
    %s89 = sphi 0, %s89
    %s91 = sphi 0, %s89
    %s92 = sphi 0, %s91
    %s106 = sphi 0, %s92
    %s112 = sphi 0, %s114
    %s115 = sphi 0, %s112
    %s116 = sphi 0, %s115
    %s132 = sphi 0, %s116
    %s138 = sphi 0, %s140
    %s141 = sphi 0, %s138
    %s142 = sphi 0, %s141
    %s158 = sphi 0, %s142
    %s164 = sphi 0, %s166
    %s167 = sphi 0, %s164
    %s168 = sphi 0, %s167
    %s184 = sphi 0, %s168
  $region4: #{unet_block.4} parent=0 // loop_header_branch
    %16 = sbr.rel (%p14) target = $region8
  $region5: #{unet_block.4} parent=0 // loop_body
    %s18 = ssub.s32 %s13, 1
    %s19 = ssub.s32 %s13, 2
    %s20 = sadd.s32 %s13, 1
    %s21 = ssub.s32 %s13, %s20
    %p22 = scmp.eq.s32.totalorder %s21, 0
    %s24 = sadd.s32 %s23, 1
    %s25 = scalar_select %p22, %s23, %s24
    %p28 = pneg %p22
    %p29 = scmp.eq.s32.totalorder %s13, 1
    %p30 = por %p28, %p29
    %p31 = scmp.ne.s32.totalorder %s23, %s26
    %p32 = scmp.eq.s32.totalorder %s13, 0
    %p33 = por %p31, %p32
    %p34 = scmp.ne.s32.totalorder %s23, %s26
    %p35 = scmp.eq.s32.totalorder %s18, 1
    %p36 = por %p34, %p35
    %p37 = scmp.ne.s32.totalorder %s26, %s27
    %p38 = scmp.eq.s32.totalorder %s18, 0
    %p39 = por %p37, %p38
    %p40 = scmp.ne.s32.totalorder %s26, %s27
    %p41 = scmp.eq.s32.totalorder %s19, 1
    %p42 = por %p40, %p41
    %p44 = scmp.ne.s32.totalorder %s27, %s43
    %p45 = scmp.eq.s32.totalorder %s19, 0
    %p46 = por %p44, %p45
    %s48 = sadd.s32 %s47, 1
    %p51 = scmp.eq.s32.totalorder %s13, 1
    %p52 = scmp.ne.s32.totalorder %s47, %s49
    %p53 = scmp.eq.s32.totalorder %s13, 0
    %p54 = por %p52, %p53
    %p55 = scmp.ne.s32.totalorder %s47, %s49
    %p56 = scmp.eq.s32.totalorder %s18, 1
    %p57 = por %p55, %p56
    %p58 = scmp.ne.s32.totalorder %s49, %s50
    %p59 = scmp.eq.s32.totalorder %s18, 0
    %p60 = por %p58, %p59
    %p61 = scmp.ne.s32.totalorder %s49, %s50
    %p62 = scmp.eq.s32.totalorder %s19, 1
    %p63 = por %p61, %p62
    %p65 = scmp.ne.s32.totalorder %s50, %s64
    %p66 = scmp.eq.s32.totalorder %s19, 0
    %p67 = por %p65, %p66
    %s69 = sadd.s32 %s68, 1
    %p72 = scmp.eq.s32.totalorder %s13, 1
    %p73 = scmp.ne.s32.totalorder %s68, %s70
    %p74 = scmp.eq.s32.totalorder %s13, 0
    %p75 = por %p73, %p74
    %p76 = scmp.ne.s32.totalorder %s68, %s70
    %p77 = scmp.eq.s32.totalorder %s18, 1
    %p78 = por %p76, %p77
    %p79 = scmp.ne.s32.totalorder %s70, %s71
    %p80 = scmp.eq.s32.totalorder %s18, 0
    %p81 = por %p79, %p80
    %p82 = scmp.ne.s32.totalorder %s70, %s71
    %p83 = scmp.eq.s32.totalorder %s19, 1
    %p84 = por %p82, %p83
    %p86 = scmp.ne.s32.totalorder %s71, %s85
    %p87 = scmp.eq.s32.totalorder %s19, 0
    %p88 = por %p86, %p87
    %s90 = sadd.s32 %s89, 1
    %p93 = scmp.eq.s32.totalorder %s13, 1
    %p94 = scmp.ne.s32.totalorder %s89, %s91
    %p95 = scmp.eq.s32.totalorder %s13, 0
    %p96 = por %p94, %p95
    %p97 = scmp.ne.s32.totalorder %s89, %s91
    %p98 = scmp.eq.s32.totalorder %s18, 1
    %p99 = por %p97, %p98
    %p100 = scmp.ne.s32.totalorder %s91, %s92
    %p101 = scmp.eq.s32.totalorder %s18, 0
    %p102 = por %p100, %p101
    %p103 = scmp.ne.s32.totalorder %s91, %s92
    %p104 = scmp.eq.s32.totalorder %s19, 1
    %p105 = por %p103, %p104
    %p107 = scmp.ne.s32.totalorder %s92, %s106
    %p108 = scmp.eq.s32.totalorder %s19, 0
    %p109 = por %p107, %p108
    %s110 = ssub.s32 %s13, %s20
    %p111 = scmp.eq.s32.totalorder %s110, 0
    %s113 = sadd.s32 %s112, 1
    %s114 = scalar_select %p111, %s112, %s113
    %p117 = pneg %p111
    %p118 = scmp.eq.s32.totalorder %s13, 1
    %p119 = por %p117, %p118
    %p120 = scmp.ne.s32.totalorder %s112, %s115
    %p121 = scmp.eq.s32.totalorder %s13, 0
    %p122 = por %p120, %p121
    %p123 = scmp.ne.s32.totalorder %s112, %s115
    %p124 = scmp.eq.s32.totalorder %s18, 1
    %p125 = por %p123, %p124
    %p126 = scmp.ne.s32.totalorder %s115, %s116
    %p127 = scmp.eq.s32.totalorder %s18, 0
    %p128 = por %p126, %p127
    %p129 = scmp.ne.s32.totalorder %s115, %s116
    %p130 = scmp.eq.s32.totalorder %s19, 1
    %p131 = por %p129, %p130
    %p133 = scmp.ne.s32.totalorder %s116, %s132
    %p134 = scmp.eq.s32.totalorder %s19, 0
    %p135 = por %p133, %p134
    %s136 = ssub.s32 %s13, %s20
    %p137 = scmp.eq.s32.totalorder %s136, 0
    %s139 = sadd.s32 %s138, 1
    %s140 = scalar_select %p137, %s138, %s139
    %p143 = pneg %p137
    %p144 = scmp.eq.s32.totalorder %s13, 1
    %p145 = por %p143, %p144
    %p146 = scmp.ne.s32.totalorder %s138, %s141
    %p147 = scmp.eq.s32.totalorder %s13, 0
    %p148 = por %p146, %p147
    %p149 = scmp.ne.s32.totalorder %s138, %s141
    %p150 = scmp.eq.s32.totalorder %s18, 1
    %p151 = por %p149, %p150
    %p152 = scmp.ne.s32.totalorder %s141, %s142
    %p153 = scmp.eq.s32.totalorder %s18, 0
    %p154 = por %p152, %p153
    %p155 = scmp.ne.s32.totalorder %s141, %s142
    %p156 = scmp.eq.s32.totalorder %s19, 1
    %p157 = por %p155, %p156
    %p159 = scmp.ne.s32.totalorder %s142, %s158
    %p160 = scmp.eq.s32.totalorder %s19, 0
    %p161 = por %p159, %p160
    %s162 = ssub.s32 %s13, %s20
    %p163 = scmp.eq.s32.totalorder %s162, 0
    %s165 = sadd.s32 %s164, 1
    %s166 = scalar_select %p163, %s164, %s165
    %p169 = pneg %p163
    %p170 = scmp.eq.s32.totalorder %s13, 1
    %p171 = por %p169, %p170
    %p172 = scmp.ne.s32.totalorder %s164, %s167
    %p173 = scmp.eq.s32.totalorder %s13, 0
    %p174 = por %p172, %p173
    %p175 = scmp.ne.s32.totalorder %s164, %s167
    %p176 = scmp.eq.s32.totalorder %s18, 1
    %p177 = por %p175, %p176
    %p178 = scmp.ne.s32.totalorder %s167, %s168
    %p179 = scmp.eq.s32.totalorder %s18, 0
    %p180 = por %p178, %p179
    %p181 = scmp.ne.s32.totalorder %s167, %s168
    %p182 = scmp.eq.s32.totalorder %s19, 1
    %p183 = por %p181, %p182
    %p185 = scmp.ne.s32.totalorder %s168, %s184
    %p186 = scmp.eq.s32.totalorder %s19, 0
    %p187 = por %p185, %p186
    %p188 = scmp.le.s32.totalorder 1, %s13
    %p189 = scmp.lt.s32.totalorder %s13, 3
    %p190 = pnand %p188, %p189
    %p191 = pneg %p190
    // Predicated region
    $region9: #{unet_block.4} parent=5 // pred_check
      _
    $region10: #{unet_block.4} parent=5 // pred_check_branch
      %193 = sbr.rel (%p190) target = $region12
    $region11: #{unet_block.4} parent=5 // pred_region
      %s194 = ssub.s32 %s13, 1
      // Predicated region
      $region13: #{unet_block.4} parent=11 // pred_check
        %p195 = pneg %p60
      $region14: #{unet_block.4} parent=11 // pred_check_branch
        %197 = sbr.rel (%p195) target = $region16
      $region15: #{unet_block.4} parent=11 // pred_region
        _
      $region16: #{unet_block.4} parent=11 // pred_fallthru
        _
      // Predicated region
      $region17: #{unet_block.4} parent=11 // pred_check
        %p198 = pneg %p81
      $region18: #{unet_block.4} parent=11 // pred_check_branch
        %200 = sbr.rel (%p198) target = $region20
      $region19: #{unet_block.4} parent=11 // pred_region
        _
      $region20: #{unet_block.4} parent=11 // pred_fallthru
        _
      // Predicated region
      $region21: #{unet_block.4} parent=11 // pred_check
        %p201 = pneg %p102
      $region22: #{unet_block.4} parent=11 // pred_check_branch
        %203 = sbr.rel (%p201) target = $region24
      $region23: #{unet_block.4} parent=11 // pred_region
        _
      $region24: #{unet_block.4} parent=11 // pred_fallthru
        _
    $region12: #{unet_block.4} parent=5 // pred_fallthru
      _
    %p204 = scmp.lt.s32.totalorder %s13, 2
    // Predicated region
    $region25: #{unet_block.4} parent=5 // pred_check
      %p205 = pneg %p204
    $region26: #{unet_block.4} parent=5 // pred_check_branch
      %207 = sbr.rel (%p205) target = $region28
    $region27: #{unet_block.4} parent=5 // pred_region
      // Predicated region
      $region29: #{unet_block.4} parent=27 // pred_check
        %p208 = pneg %p33
      $region30: #{unet_block.4} parent=27 // pred_check_branch
        %210 = sbr.rel (%p208) target = $region32
      $region31: #{unet_block.4} parent=27 // pred_region
        %p211 = scmp.lt.s32.totalorder %s13, 1
        %s212 = scalar_select %p211, %s13, 1
        %s213 = smul.addr %s212, 2
        %s214 = smul.addr %s213, 4
        %s215 = scalar_lea.vmem %s0, %s214
      $region32: #{unet_block.4} parent=27 // pred_fallthru
        _
    $region28: #{unet_block.4} parent=5 // pred_fallthru
      _
    %p216 = scmp.le.s32.totalorder 1, %s13
    %p217 = scmp.lt.s32.totalorder %s13, 3
    %p218 = pnand %p216, %p217
    %p219 = pneg %p218
    // Predicated region
    $region33: #{unet_block.4} parent=5 // pred_check
      _
    $region34: #{unet_block.4} parent=5 // pred_check_branch
      %221 = sbr.rel (%p218) target = $region36
    $region35: #{unet_block.4} parent=5 // pred_region
      %s222 = ssub.s32 %s13, 1
      %p223 = scmp.lt.s32.totalorder %s18, 1
      %s224 = scalar_select %p223, %s18, 1
      %s225 = smul.addr %s224, 2
      %s226 = smul.addr %s225, 4
      %s227 = scalar_lea.vmem %s0, %s226
      %p228 = pneg %p39
      %p229 = pneg %p36
      %p230 = pneg %p60
      %p231 = pneg %p57
      %p232 = pneg %p81
      %p233 = pneg %p78
      %p234 = pneg %p102
      %p235 = pneg %p99
      %p236 = pneg %p128
      %p237 = pneg %p125
      %p238 = scmp.lt.s32.totalorder %s18, 1
      %s239 = scalar_select %p238, %s18, 1
      %s240 = smul.addr %s239, 2
      %s241 = smul.addr %s240, 8
      %s242 = scalar_lea.vmem %s4, %s241
      %p243 = pneg %p154
      %p244 = pneg %p151
      %p245 = scmp.lt.s32.totalorder %s18, 1
      %s246 = scalar_select %p245, %s18, 1
      %s247 = scalar_lea.vmem %s5, %s246
      %p248 = pneg %p180
      %p249 = pneg %p177
      %p250 = scmp.lt.s32.totalorder %s18, 1
      %s251 = scalar_select %p250, %s18, 1
      %s252 = scalar_lea.vmem %s6, %s251
      %p253 = scmp.lt.s32.totalorder %s18, 1
      %s254 = scalar_select %p253, %s18, 1
      %s255 = smul.addr %s254, 2
      %s256 = smul.addr %s255, 4
      %s257 = scalar_lea.vmem %s0, %s256
      %p258 = scmp.lt.s32.totalorder %s18, 1
      %s259 = scalar_select %p258, %s18, 1
      %s260 = smul.addr %s259, 2
      %s261 = smul.addr %s260, 8
      %s262 = scalar_lea.vmem %s4, %s261
      %p263 = scmp.lt.s32.totalorder %s18, 1
      %s264 = scalar_select %p263, %s18, 1
      %s265 = scalar_lea.vmem %s5, %s264
      %p266 = scmp.lt.s32.totalorder %s18, 1
      %s267 = scalar_select %p266, %s18, 1
      %s268 = scalar_lea.vmem %s6, %s267
      %v269 = vld [vmem:[%s257] sm:$0xf]
      %v270 = vld [vmem:[%s257 + $0x4] sm:$0xf]
      %v271 = vunpack.c.l.bf16 %v269
      %v272 = vunpack.c.l.bf16 %v270
      %v273 = vld [vmem:[%s1] sm:$0x1]
      %v275 = vperm.slane %v273, 0
      %v277 = vmul.f32 %v271, %v275
      %v278 = vmul.f32 %v272, %v275
      %v279 = vld [vmem:[%s2] sm:$0x1]
      %v281 = vperm.slane %v279, 0
      %v283 = vadd.f32 %v277, %v281
      %v284 = vadd.f32 %v278, %v281
      %v285 = vmax.f32 %v283, 0.0
      %v286 = vmax.f32 %v284, 0.0
      %287 = vst [vmem:[#allocation2] sm:$0x1] 0.0
      %288 = vst [vmem:[#allocation2 + $0x11] sm:$0x1] 0.0
      %289 = vst [vmem:[#allocation2 + $0x1] sm:$0xff] %v285
      %290 = vst [vmem:[#allocation2 + $0x9] sm:$0xff] %v286
      %v291 = vld [vmem:[#allocation2] sm:$0xff]
      %v292 = vld [vmem:[#allocation2 + $0x8] sm:$0xff]
      %v293 = vpack.c.bf16 %v292, %v291
      %v294 = vld [vmem:[%s3] sm:$0xf]
      %v295 = vld [vmem:[%s3 + $0x4] sm:$0xf]
      %v296 = vld [vmem:[%s3 + $0x8] sm:$0xf]
      %v297 = vld [vmem:[%s3 + $0xc] sm:$0xf]
      %v298 = vld [vmem:[%s3 + $0x10] sm:$0xf]
      %v299 = vld [vmem:[%s3 + $0x14] sm:$0xf]
      %v300 = vld [vmem:[%s3 + $0x18] sm:$0xf]
      %v301 = vld [vmem:[%s3 + $0x1c] sm:$0xf]
      %v302 = vld [vmem:[%s3 + $0x20] sm:$0xf]
      %v303 = vld [vmem:[%s3 + $0x24] sm:$0xf]
      %v304 = vld [vmem:[%s3 + $0x28] sm:$0xf]
      %v305 = vld [vmem:[%s3 + $0x2c] sm:$0xf]
      %v306 = vld [vmem:[%s3 + $0x30] sm:$0xf]
      %v307 = vld [vmem:[%s3 + $0x34] sm:$0xf]
      %v308 = vld [vmem:[%s3 + $0x38] sm:$0xf]
      %v309 = vld [vmem:[%s3 + $0x3c] sm:$0xf]
      %v310 = vld [vmem:[#allocation2 + $0x1] sm:$0xff]
      %v311 = vld [vmem:[#allocation2 + $0x9] sm:$0xff]
      %v312 = vpack.c.bf16 %v311, %v310
      %s313 = scalar_lea.vmem %s3, 64
      %v314 = vld [vmem:[%s313] sm:$0xf]
      %v315 = vld [vmem:[%s313 + $0x4] sm:$0xf]
      %v316 = vld [vmem:[%s313 + $0x8] sm:$0xf]
      %v317 = vld [vmem:[%s313 + $0xc] sm:$0xf]
      %v318 = vld [vmem:[%s313 + $0x10] sm:$0xf]
      %v319 = vld [vmem:[%s313 + $0x14] sm:$0xf]
      %v320 = vld [vmem:[%s313 + $0x18] sm:$0xf]
      %v321 = vld [vmem:[%s313 + $0x1c] sm:$0xf]
      %v322 = vld [vmem:[%s313 + $0x20] sm:$0xf]
      %v323 = vld [vmem:[%s313 + $0x24] sm:$0xf]
      %v324 = vld [vmem:[%s313 + $0x28] sm:$0xf]
      %v325 = vld [vmem:[%s313 + $0x2c] sm:$0xf]
      %v326 = vld [vmem:[%s313 + $0x30] sm:$0xf]
      %v327 = vld [vmem:[%s313 + $0x34] sm:$0xf]
      %v328 = vld [vmem:[%s313 + $0x38] sm:$0xf]
      %v329 = vld [vmem:[%s313 + $0x3c] sm:$0xf]
      %v346 = vunpack.c.l.b16 %v314
      %v347 = vunpack.c.l.b16 %v315
      %v348 = vunpack.c.l.b16 %v316
      %v349 = vunpack.c.l.b16 %v317
      %v350 = vunpack.c.l.b16 %v318
      %v351 = vunpack.c.l.b16 %v319
      %v352 = vunpack.c.l.b16 %v320
      %v353 = vunpack.c.l.b16 %v321
      %v354 = vunpack.c.l.b16 %v322
      %v355 = vunpack.c.l.b16 %v323
      %v356 = vunpack.c.l.b16 %v324
      %v357 = vunpack.c.l.b16 %v325
      %v358 = vunpack.c.l.b16 %v326
      %v359 = vunpack.c.l.b16 %v327
      %v360 = vunpack.c.l.b16 %v328
      %v361 = vunpack.c.l.b16 %v329
      %v362 = vpack.c.b16 %v347, %v346
      %v363 = vpack.c.b16 %v349, %v348
      %v364 = vpack.c.b16 %v351, %v350
      %v365 = vpack.c.b16 %v353, %v352
      %v366 = vpack.c.b16 %v355, %v354
      %v367 = vpack.c.b16 %v357, %v356
      %v368 = vpack.c.b16 %v359, %v358
      %v369 = vpack.c.b16 %v361, %v360
      %378 = vmatpush.bf16.msra.mxu0 %v369
      %379 = vmatpush.bf16.msra.mxu0 %v368
      %380 = vmatpush.bf16.msra.mxu0 %v367
      %381 = vmatpush.bf16.msra.mxu0 %v366
      %382 = vmatpush.bf16.msra.mxu0 %v365
      %383 = vmatpush.bf16.msra.mxu0 %v364
      %384 = vmatpush.bf16.msra.mxu0 %v363
      %385 = vmatpush.bf16.msra.mxu0 %v362
      %386 = vmatmul.bf16.gmra.mxu0 %v312
      %v387 = vpop.f32.mrf.mxu0
      %v388 = vadd.f32 0.0, %v387
      %v389 = vpop.f32.mrf.mxu0
      %v390 = vadd.f32 0.0, %v389
      %391 = vdwg.mxu0
      %v408 = vunpack.c.l.b16 %v294
      %v409 = vunpack.c.l.b16 %v295
      %v410 = vunpack.c.l.b16 %v296
      %v411 = vunpack.c.l.b16 %v297
      %v412 = vunpack.c.l.b16 %v298
      %v413 = vunpack.c.l.b16 %v299
      %v414 = vunpack.c.l.b16 %v300
      %v415 = vunpack.c.l.b16 %v301
      %v416 = vunpack.c.l.b16 %v302
      %v417 = vunpack.c.l.b16 %v303
      %v418 = vunpack.c.l.b16 %v304
      %v419 = vunpack.c.l.b16 %v305
      %v420 = vunpack.c.l.b16 %v306
      %v421 = vunpack.c.l.b16 %v307
      %v422 = vunpack.c.l.b16 %v308
      %v423 = vunpack.c.l.b16 %v309
      %v424 = vpack.c.b16 %v409, %v408
      %v425 = vpack.c.b16 %v411, %v410
      %v426 = vpack.c.b16 %v413, %v412
      %v427 = vpack.c.b16 %v415, %v414
      %v428 = vpack.c.b16 %v417, %v416
      %v429 = vpack.c.b16 %v419, %v418
      %v430 = vpack.c.b16 %v421, %v420
      %v431 = vpack.c.b16 %v423, %v422
      %440 = vmatpush.bf16.msra.mxu0 %v431
      %441 = vmatpush.bf16.msra.mxu0 %v430
      %442 = vmatpush.bf16.msra.mxu0 %v429
      %443 = vmatpush.bf16.msra.mxu0 %v428
      %444 = vmatpush.bf16.msra.mxu0 %v427
      %445 = vmatpush.bf16.msra.mxu0 %v426
      %446 = vmatpush.bf16.msra.mxu0 %v425
      %447 = vmatpush.bf16.msra.mxu0 %v424
      %448 = vmatmul.bf16.gmra.mxu0 %v293
      %v449 = vpop.f32.mrf.mxu0
      %v450 = vadd.f32 %v388, %v449
      %v451 = vpop.f32.mrf.mxu0
      %v452 = vadd.f32 %v390, %v451
      %453 = vdwg.mxu0
      %v454 = vld [vmem:[#allocation2 + $0x2] sm:$0xff]
      %v455 = vld [vmem:[#allocation2 + $0xa] sm:$0xff]
      %v456 = vpack.c.bf16 %v455, %v454
      %s457 = scalar_lea.vmem %s3, 128
      %v458 = vld [vmem:[%s457] sm:$0xf]
      %v459 = vld [vmem:[%s457 + $0x4] sm:$0xf]
      %v460 = vld [vmem:[%s457 + $0x8] sm:$0xf]
      %v461 = vld [vmem:[%s457 + $0xc] sm:$0xf]
      %v462 = vld [vmem:[%s457 + $0x10] sm:$0xf]
      %v463 = vld [vmem:[%s457 + $0x14] sm:$0xf]
      %v464 = vld [vmem:[%s457 + $0x18] sm:$0xf]
      %v465 = vld [vmem:[%s457 + $0x1c] sm:$0xf]
      %v466 = vld [vmem:[%s457 + $0x20] sm:$0xf]
      %v467 = vld [vmem:[%s457 + $0x24] sm:$0xf]
      %v468 = vld [vmem:[%s457 + $0x28] sm:$0xf]
      %v469 = vld [vmem:[%s457 + $0x2c] sm:$0xf]
      %v470 = vld [vmem:[%s457 + $0x30] sm:$0xf]
      %v471 = vld [vmem:[%s457 + $0x34] sm:$0xf]
      %v472 = vld [vmem:[%s457 + $0x38] sm:$0xf]
      %v473 = vld [vmem:[%s457 + $0x3c] sm:$0xf]
      %v490 = vunpack.c.l.b16 %v458
      %v491 = vunpack.c.l.b16 %v459
      %v492 = vunpack.c.l.b16 %v460
      %v493 = vunpack.c.l.b16 %v461
      %v494 = vunpack.c.l.b16 %v462
      %v495 = vunpack.c.l.b16 %v463
      %v496 = vunpack.c.l.b16 %v464
      %v497 = vunpack.c.l.b16 %v465
      %v498 = vunpack.c.l.b16 %v466
      %v499 = vunpack.c.l.b16 %v467
      %v500 = vunpack.c.l.b16 %v468
      %v501 = vunpack.c.l.b16 %v469
      %v502 = vunpack.c.l.b16 %v470
      %v503 = vunpack.c.l.b16 %v471
      %v504 = vunpack.c.l.b16 %v472
      %v505 = vunpack.c.l.b16 %v473
      %v506 = vpack.c.b16 %v491, %v490
      %v507 = vpack.c.b16 %v493, %v492
      %v508 = vpack.c.b16 %v495, %v494
      %v509 = vpack.c.b16 %v497, %v496
      %v510 = vpack.c.b16 %v499, %v498
      %v511 = vpack.c.b16 %v501, %v500
      %v512 = vpack.c.b16 %v503, %v502
      %v513 = vpack.c.b16 %v505, %v504
      %522 = vmatpush.bf16.msra.mxu0 %v513
      %523 = vmatpush.bf16.msra.mxu0 %v512
      %524 = vmatpush.bf16.msra.mxu0 %v511
      %525 = vmatpush.bf16.msra.mxu0 %v510
      %526 = vmatpush.bf16.msra.mxu0 %v509
      %527 = vmatpush.bf16.msra.mxu0 %v508
      %528 = vmatpush.bf16.msra.mxu0 %v507
      %529 = vmatpush.bf16.msra.mxu0 %v506
      %530 = vmatmul.bf16.gmra.mxu0 %v456
      %v531 = vpop.f32.mrf.mxu0
      %v532 = vadd.f32 0.0, %v531
      %v533 = vpop.f32.mrf.mxu0
      %v534 = vadd.f32 0.0, %v533
      %535 = vdwg.mxu0
      %v536 = vadd.f32 %v450, %v532
      %v537 = vadd.f32 %v452, %v534
      %538 = vst [vmem:[%s262] sm:$0xff] %v536
      %539 = vst [vmem:[%s262 + $0x8] sm:$0xff] %v537
      %v540 = vadd.f32 %v536, %v537
      %v541 = vrot.slane %v540, 4
      %v542 = vadd.f32 %v540, %v541
      %v543 = vrot.slane %v542, 2
      %v544 = vadd.f32 %v542, %v543
      %v545 = vrot.slane %v544, 1
      %v546 = vadd.f32 %v544, %v545
      %547 = vst [vmem:[%s265] sm:$0x1] %v546
      %v548 = vmul.f32 %v536, %v536
      %v549 = vmul.f32 %v537, %v537
      %v550 = vadd.f32 %v548, %v549
      %v551 = vrot.slane %v550, 4
      %v552 = vadd.f32 %v550, %v551
      %v553 = vrot.slane %v552, 2
      %v554 = vadd.f32 %v552, %v553
      %v555 = vrot.slane %v554, 1
      %v556 = vadd.f32 %v554, %v555
      %557 = vst [vmem:[%s268] sm:$0x1] %v556
      %p558 = scmp.lt.s32.totalorder %s18, 1
      %s559 = scalar_select %p558, %s18, 1
      %s560 = smul.addr %s559, 2
      %s561 = smul.addr %s560, 8
      %s562 = scalar_lea.vmem %s4, %s561
      %p563 = scmp.lt.s32.totalorder %s18, 1
      %s564 = scalar_select %p563, %s18, 1
      %s565 = scalar_lea.vmem %s5, %s564
      %p566 = scmp.lt.s32.totalorder %s18, 1
      %s567 = scalar_select %p566, %s18, 1
      %s568 = scalar_lea.vmem %s6, %s567
      // Predicated region
      $region37: #{unet_block.4} parent=35 // pred_check
        %p569 = pneg %p125
      $region38: #{unet_block.4} parent=35 // pred_check_branch
        %571 = sbr.rel (%p569) target = $region40
      $region39: #{unet_block.4} parent=35 // pred_region
        _
      $region40: #{unet_block.4} parent=35 // pred_fallthru
        _
      // Predicated region
      $region41: #{unet_block.4} parent=35 // pred_check
        %p572 = pneg %p151
      $region42: #{unet_block.4} parent=35 // pred_check_branch
        %574 = sbr.rel (%p572) target = $region44
      $region43: #{unet_block.4} parent=35 // pred_region
        _
      $region44: #{unet_block.4} parent=35 // pred_fallthru
        _
      // Predicated region
      $region45: #{unet_block.4} parent=35 // pred_check
        %p575 = pneg %p177
      $region46: #{unet_block.4} parent=35 // pred_check_branch
        %577 = sbr.rel (%p575) target = $region48
      $region47: #{unet_block.4} parent=35 // pred_region
        _
      $region48: #{unet_block.4} parent=35 // pred_fallthru
        _
    $region36: #{unet_block.4} parent=5 // pred_fallthru
      _
    %p578 = scmp.le.s32.totalorder 2, %s13
    // Predicated region
    $region49: #{unet_block.4} parent=5 // pred_check
      %p579 = pneg %p578
    $region50: #{unet_block.4} parent=5 // pred_check_branch
      %581 = sbr.rel (%p579) target = $region52
    $region51: #{unet_block.4} parent=5 // pred_region
      %s582 = ssub.s32 %s13, 2
      // Predicated region
      $region53: #{unet_block.4} parent=51 // pred_check
        %p583 = pneg %p131
      $region54: #{unet_block.4} parent=51 // pred_check_branch
        %585 = sbr.rel (%p583) target = $region56
      $region55: #{unet_block.4} parent=51 // pred_region
        %p586 = scmp.lt.s32.totalorder %s19, 1
        %s587 = scalar_select %p586, %s19, 1
        %s588 = smul.addr %s587, 2
        %s589 = smul.addr %s588, 8
        %s590 = scalar_lea.vmem %s4, %s589
      $region56: #{unet_block.4} parent=51 // pred_fallthru
        _
      // Predicated region
      $region57: #{unet_block.4} parent=51 // pred_check
        %p591 = pneg %p157
      $region58: #{unet_block.4} parent=51 // pred_check_branch
        %593 = sbr.rel (%p591) target = $region60
      $region59: #{unet_block.4} parent=51 // pred_region
        %p594 = scmp.lt.s32.totalorder %s19, 1
        %s595 = scalar_select %p594, %s19, 1
        %s596 = scalar_lea.vmem %s5, %s595
      $region60: #{unet_block.4} parent=51 // pred_fallthru
        _
      // Predicated region
      $region61: #{unet_block.4} parent=51 // pred_check
        %p597 = pneg %p183
      $region62: #{unet_block.4} parent=51 // pred_check_branch
        %599 = sbr.rel (%p597) target = $region64
      $region63: #{unet_block.4} parent=51 // pred_region
        %p600 = scmp.lt.s32.totalorder %s19, 1
        %s601 = scalar_select %p600, %s19, 1
        %s602 = scalar_lea.vmem %s6, %s601
      $region64: #{unet_block.4} parent=51 // pred_fallthru
        _
    $region52: #{unet_block.4} parent=5 // pred_fallthru
      _
  $region6: #{unet_block.4} parent=0 // loop_footer
    %s17 = sadd.s32 1, %s13
  $region7: #{unet_block.4} parent=0 // loop_footer_branch
    %12 = sbr.rel target = $region3
  $region8: #{unet_block.4} parent=0 // loop_exit
    _

// kernel: unet_block.5
$region0: #{unet_block.5}
  #allocation0 [shape = 'u32[]', space=smem, size = 0x4, offset = 0x4, fixed_abs, tag = 'smem constant byte address 0x4 - core index']
  #allocation1 [shape = 'u32[72,128]{1,0:T(1,128)}', space=vmem, size = 0x9000, scoped, tag = 'internal scratch']
  %s0 = inlined_call_operand.vmem [shape: f32[32,128], index: 0, kind: input, shape index: {}]
  %s1 = inlined_call_operand.vmem [shape: f32[1,128], index: 1, kind: input, shape index: {}]
  %s2 = inlined_call_operand.vmem [shape: f32[1,128], index: 2, kind: input, shape index: {}]
  %s3 = inlined_call_operand.vmem [shape: f32[32,128], index: 3, kind: output, shape index: {}]
  %s4 = sld [smem:[#allocation0]]
  $region45: #{unet_block.5} parent=0
    _
  %s6 = ssub.s32 1, %s4
  %s7 = scalar_select 0, %s6, %s4
  loop: start=0, step=1, limit=4
  $region2: #{unet_block.5} parent=0 // loop_pre_header
    _
  $region3: #{unet_block.5} parent=0 // loop_header
    %s9 = sphi 0, %s13
    %p10 = scmp.ge.s32.totalorder %s9, 4
    %s19 = sphi 0, %s21
    %s22 = sphi 0, %s19
    %s23 = sphi 0, %s22
    %s39 = sphi 0, %s23
    %s43 = sphi 0, %s43
    %s45 = sphi 0, %s43
    %s46 = sphi 0, %s45
    %s60 = sphi 0, %s46
    %s64 = sphi 0, %s64
    %s66 = sphi 0, %s64
    %s67 = sphi 0, %s66
    %s81 = sphi 0, %s67
    %s87 = sphi 0, %s89
    %s90 = sphi 0, %s87
    %s91 = sphi 0, %s90
    %s107 = sphi 0, %s91
  $region4: #{unet_block.5} parent=0 // loop_header_branch
    %12 = sbr.rel (%p10) target = $region8
  $region5: #{unet_block.5} parent=0 // loop_body
    %s14 = ssub.s32 %s9, 1
    %s15 = ssub.s32 %s9, 2
    %s16 = sadd.s32 %s9, 1
    %s17 = ssub.s32 %s9, %s16
    %p18 = scmp.eq.s32.totalorder %s17, 0
    %s20 = sadd.s32 %s19, 1
    %s21 = scalar_select %p18, %s19, %s20
    %p24 = pneg %p18
    %p25 = scmp.eq.s32.totalorder %s9, 1
    %p26 = por %p24, %p25
    %p27 = scmp.ne.s32.totalorder %s19, %s22
    %p28 = scmp.eq.s32.totalorder %s9, 0
    %p29 = por %p27, %p28
    %p30 = scmp.ne.s32.totalorder %s19, %s22
    %p31 = scmp.eq.s32.totalorder %s14, 1
    %p32 = por %p30, %p31
    %p33 = scmp.ne.s32.totalorder %s22, %s23
    %p34 = scmp.eq.s32.totalorder %s14, 0
    %p35 = por %p33, %p34
    %p36 = scmp.ne.s32.totalorder %s22, %s23
    %p37 = scmp.eq.s32.totalorder %s15, 1
    %p38 = por %p36, %p37
    %p40 = scmp.ne.s32.totalorder %s23, %s39
    %p41 = scmp.eq.s32.totalorder %s15, 0
    %p42 = por %p40, %p41
    %s44 = sadd.s32 %s43, 1
    %p47 = scmp.eq.s32.totalorder %s9, 1
    %p48 = scmp.ne.s32.totalorder %s43, %s45
    %p49 = scmp.eq.s32.totalorder %s9, 0
    %p50 = por %p48, %p49
    %p51 = scmp.ne.s32.totalorder %s43, %s45
    %p52 = scmp.eq.s32.totalorder %s14, 1
    %p53 = por %p51, %p52
    %p54 = scmp.ne.s32.totalorder %s45, %s46
    %p55 = scmp.eq.s32.totalorder %s14, 0
    %p56 = por %p54, %p55
    %p57 = scmp.ne.s32.totalorder %s45, %s46
    %p58 = scmp.eq.s32.totalorder %s15, 1
    %p59 = por %p57, %p58
    %p61 = scmp.ne.s32.totalorder %s46, %s60
    %p62 = scmp.eq.s32.totalorder %s15, 0
    %p63 = por %p61, %p62
    %s65 = sadd.s32 %s64, 1
    %p68 = scmp.eq.s32.totalorder %s9, 1
    %p69 = scmp.ne.s32.totalorder %s64, %s66
    %p70 = scmp.eq.s32.totalorder %s9, 0
    %p71 = por %p69, %p70
    %p72 = scmp.ne.s32.totalorder %s64, %s66
    %p73 = scmp.eq.s32.totalorder %s14, 1
    %p74 = por %p72, %p73
    %p75 = scmp.ne.s32.totalorder %s66, %s67
    %p76 = scmp.eq.s32.totalorder %s14, 0
    %p77 = por %p75, %p76
    %p78 = scmp.ne.s32.totalorder %s66, %s67
    %p79 = scmp.eq.s32.totalorder %s15, 1
    %p80 = por %p78, %p79
    %p82 = scmp.ne.s32.totalorder %s67, %s81
    %p83 = scmp.eq.s32.totalorder %s15, 0
    %p84 = por %p82, %p83
    %s85 = ssub.s32 %s9, %s16
    %p86 = scmp.eq.s32.totalorder %s85, 0
    %s88 = sadd.s32 %s87, 1
    %s89 = scalar_select %p86, %s87, %s88
    %p92 = pneg %p86
    %p93 = scmp.eq.s32.totalorder %s9, 1
    %p94 = por %p92, %p93
    %p95 = scmp.ne.s32.totalorder %s87, %s90
    %p96 = scmp.eq.s32.totalorder %s9, 0
    %p97 = por %p95, %p96
    %p98 = scmp.ne.s32.totalorder %s87, %s90
    %p99 = scmp.eq.s32.totalorder %s14, 1
    %p100 = por %p98, %p99
    %p101 = scmp.ne.s32.totalorder %s90, %s91
    %p102 = scmp.eq.s32.totalorder %s14, 0
    %p103 = por %p101, %p102
    %p104 = scmp.ne.s32.totalorder %s90, %s91
    %p105 = scmp.eq.s32.totalorder %s15, 1
    %p106 = por %p104, %p105
    %p108 = scmp.ne.s32.totalorder %s91, %s107
    %p109 = scmp.eq.s32.totalorder %s15, 0
    %p110 = por %p108, %p109
    %p111 = scmp.le.s32.totalorder 1, %s9
    %p112 = scmp.lt.s32.totalorder %s9, 3
    %p113 = pnand %p111, %p112
    %p114 = pneg %p113
    // Predicated region
    $region9: #{unet_block.5} parent=5 // pred_check
      _
    $region10: #{unet_block.5} parent=5 // pred_check_branch
      %116 = sbr.rel (%p113) target = $region12
    $region11: #{unet_block.5} parent=5 // pred_region
      %s117 = ssub.s32 %s9, 1
      // Predicated region
      $region13: #{unet_block.5} parent=11 // pred_check
        %p118 = pneg %p56
      $region14: #{unet_block.5} parent=11 // pred_check_branch
        %120 = sbr.rel (%p118) target = $region16
      $region15: #{unet_block.5} parent=11 // pred_region
        _
      $region16: #{unet_block.5} parent=11 // pred_fallthru
        _
      // Predicated region
      $region17: #{unet_block.5} parent=11 // pred_check
        %p121 = pneg %p77
      $region18: #{unet_block.5} parent=11 // pred_check_branch
        %123 = sbr.rel (%p121) target = $region20
      $region19: #{unet_block.5} parent=11 // pred_region
        _
      $region20: #{unet_block.5} parent=11 // pred_fallthru
        _
    $region12: #{unet_block.5} parent=5 // pred_fallthru
      _
    %p124 = scmp.lt.s32.totalorder %s9, 2
    // Predicated region
    $region21: #{unet_block.5} parent=5 // pred_check
      %p125 = pneg %p124
    $region22: #{unet_block.5} parent=5 // pred_check_branch
      %127 = sbr.rel (%p125) target = $region24
    $region23: #{unet_block.5} parent=5 // pred_region
      // Predicated region
      $region25: #{unet_block.5} parent=23 // pred_check
        %p128 = pneg %p29
      $region26: #{unet_block.5} parent=23 // pred_check_branch
        %130 = sbr.rel (%p128) target = $region28
      $region27: #{unet_block.5} parent=23 // pred_region
        %s131 = smul.u32 2, %s9
        %p132 = scmp.lt.s32.totalorder %s131, 3
        %s133 = scalar_select %p132, %s131, 3
        %s134 = smul.addr %s133, 8
        %s135 = scalar_lea.vmem %s0, %s134
        %s136 = smul.u32 2, %s9
      $region28: #{unet_block.5} parent=23 // pred_fallthru
        _
    $region24: #{unet_block.5} parent=5 // pred_fallthru
      _
    %p137 = scmp.le.s32.totalorder 1, %s9
    %p138 = scmp.lt.s32.totalorder %s9, 3
    %p139 = pnand %p137, %p138
    %p140 = pneg %p139
    // Predicated region
    $region29: #{unet_block.5} parent=5 // pred_check
      _
    $region30: #{unet_block.5} parent=5 // pred_check_branch
      %142 = sbr.rel (%p139) target = $region32
    $region31: #{unet_block.5} parent=5 // pred_region
      %s143 = ssub.s32 %s9, 1
      %s144 = smul.u32 2, %s14
      %p145 = scmp.lt.s32.totalorder %s144, 3
      %s146 = scalar_select %p145, %s144, 3
      %s147 = smul.addr %s146, 8
      %s148 = scalar_lea.vmem %s0, %s147
      %p149 = pneg %p35
      %p150 = pneg %p32
      %p151 = pneg %p56
      %p152 = pneg %p53
      %p153 = pneg %p77
      %p154 = pneg %p74
      %p155 = pneg %p103
      %p156 = pneg %p100
      %s157 = smul.u32 2, %s14
      %p158 = scmp.lt.s32.totalorder %s157, 3
      %s159 = scalar_select %p158, %s157, 3
      %s160 = smul.addr %s159, 8
      %s161 = scalar_lea.vmem %s3, %s160
      %s162 = smul.u32 2, %s14
      %p163 = scmp.lt.s32.totalorder %s162, 3
      %s164 = scalar_select %p163, %s162, 3
      %s165 = smul.addr %s164, 8
      %s166 = scalar_lea.vmem %s0, %s165
      %s167 = smul.u32 2, %s14
      %s168 = smul.u32 2, %s14
      %p169 = scmp.lt.s32.totalorder %s168, 3
      %s170 = scalar_select %p169, %s168, 3
      %s171 = smul.addr %s170, 8
      %s172 = scalar_lea.vmem %s3, %s171
      %s173 = smul.u32 2, %s14
      %v174 = vld [vmem:[%s166] sm:$0xff]
      %v175 = vld [vmem:[%s166 + $0x8] sm:$0xff]
      %v176 = vld [vmem:[%s1] sm:$0x1]
      %v178 = vperm.slane %v176, 0
      %v180 = vmul.f32 %v174, %v178
      %v181 = vmul.f32 %v175, %v178
      %v182 = vld [vmem:[%s2] sm:$0x1]
      %v184 = vperm.slane %v182, 0
      %v186 = vadd.f32 %v180, %v184
      %v187 = vadd.f32 %v181, %v184
      %v188 = vmax.f32 %v186, 0.0
      %v189 = vmax.f32 %v187, 0.0
      %190 = vst [vmem:[%s172] sm:$0xff] %v188
      %191 = vst [vmem:[%s172 + $0x8] sm:$0xff] %v189
      %s192 = smul.u32 2, %s14
      %p193 = scmp.lt.s32.totalorder %s192, 3
      %s194 = scalar_select %p193, %s192, 3
      %s195 = smul.addr %s194, 8
      %s196 = scalar_lea.vmem %s3, %s195
      // Predicated region
      $region33: #{unet_block.5} parent=31 // pred_check
        %p197 = pneg %p100
      $region34: #{unet_block.5} parent=31 // pred_check_branch
        %199 = sbr.rel (%p197) target = $region36
      $region35: #{unet_block.5} parent=31 // pred_region
        %s200 = smul.u32 2, %s14
      $region36: #{unet_block.5} parent=31 // pred_fallthru
        _
    $region32: #{unet_block.5} parent=5 // pred_fallthru
      _
    %p201 = scmp.le.s32.totalorder 2, %s9
    // Predicated region
    $region37: #{unet_block.5} parent=5 // pred_check
      %p202 = pneg %p201
    $region38: #{unet_block.5} parent=5 // pred_check_branch
      %204 = sbr.rel (%p202) target = $region40
    $region39: #{unet_block.5} parent=5 // pred_region
      %s205 = ssub.s32 %s9, 2
      // Predicated region
      $region41: #{unet_block.5} parent=39 // pred_check
        %p206 = pneg %p106
      $region42: #{unet_block.5} parent=39 // pred_check_branch
        %208 = sbr.rel (%p206) target = $region44
      $region43: #{unet_block.5} parent=39 // pred_region
        %s209 = smul.u32 2, %s15
        %p210 = scmp.lt.s32.totalorder %s209, 3
        %s211 = scalar_select %p210, %s209, 3
        %s212 = smul.addr %s211, 8
        %s213 = scalar_lea.vmem %s3, %s212
      $region44: #{unet_block.5} parent=39 // pred_fallthru
        _
    $region40: #{unet_block.5} parent=5 // pred_fallthru
      _
  $region6: #{unet_block.5} parent=0 // loop_footer
    %s13 = sadd.s32 1, %s9
  $region7: #{unet_block.5} parent=0 // loop_footer_branch
    %8 = sbr.rel target = $region3
  $region8: #{unet_block.5} parent=0 // loop_exit
    _

</llo_original>
